<compile_context>
chip_gen: v7x
topology: tpu7x:2x2x1
jax: 0.10.0
libtpu: 0.0.40
codegen_flags: <defaults>
</compile_context>

<pallas_src>
import numpy as np
import jax
import jax.numpy as jnp
from jax.experimental import pallas as pl
from jax.experimental.pallas import tpu as pltpu

FEAT = 512          # Encoder.fc expects 512 input features
LANE = 128          # TPU lane width
FEAT_BLK = 128      # FEAT row-block size (keeps the live post-ReLU tile small)


def _ceil_to(x, m):
    return ((x + m - 1) // m) * m


def _make_encoder_kernel(hw_tile, inv_hw, feat, feat_blk):
    n_fblk = feat // feat_blk
    n_lane = hw_tile // LANE

    def kernel(x_ref, ex_ref, w_ref, wfc_ref, bfc_ref, o_ref, acc_ref):
        # x_ref  : (1, C, hw_tile)     image-channel chunk (NCHW kept lane-dense, no HBM transpose)
        # ex_ref : (3, hw_tile)        shared per-position rows: [coord_h ; coord_w ; valid]
        # w_ref  : (FEAT, C+3)         fused 1x1-conv weight: [W_img | W_coord | b_fe]
        # wfc_ref: (FEAT, OUT)         fc weight
        # bfc_ref: (1, OUT)            fc bias (row)
        # o_ref  : (1, 1, OUT)         output row for this image
        # acc_ref: (FEAT, 128) f32     lane-partial pooled-feature accumulator (VMEM scratch)
        h = pl.program_id(1)

        @pl.when(h == 0)
        def _init():
            acc_ref[...] = jnp.zeros_like(acc_ref)

        # One fused RHS per chunk: image channels + coord channels + bias/valid row (7/8 sublanes used).
        rhs = jnp.concatenate([x_ref[0], ex_ref[...]], axis=0)            # (C+3, hw_tile)

        # 1x1-conv -> ReLU -> spatial partial-sum; FEAT handled in small row blocks.
        for i in range(n_fblk):
            lo, hi = i * feat_blk, (i + 1) * feat_blk
            z = jnp.maximum(
                jnp.dot(w_ref[lo:hi, :], rhs, preferred_element_type=jnp.float32),
                0.0)                                                       # (feat_blk, hw_tile)
            part = z[:, 0:LANE]
            for j in range(1, n_lane):                                     # lane-aligned slices: free
                part = part + z[:, j * LANE:(j + 1) * LANE]
            acc_ref[lo:hi, :] = acc_ref[lo:hi, :] + part                   # dense (feat_blk, 128) update

        @pl.when(h == pl.num_programs(1) - 1)
        def _finalize():
            # Final cross-lane reduce (once per image), mean scaling, fc, single lane-oriented store.
            pooled = jnp.sum(acc_ref[...], axis=-1, keepdims=True) * inv_hw        # (FEAT, 1)
            out_row = jnp.sum(pooled * wfc_ref[...], axis=0, keepdims=True)        # (1, OUT)
            o_ref[0] = (out_row + bfc_ref[...]).astype(o_ref.dtype)

    return kernel


def encoder_forward(x_nchw, w_fe, b_fe, w_fc, b_fc, *, max_hw_tile=512):
    """x_nchw: (N, C, H, W) f32; w_fe: (C+2, 512); b_fe: (512,); w_fc: (512, OUT); b_fc: (OUT,)."""
    N, C, H, W = x_nchw.shape
    HW = H * W
    OUT = w_fc.shape[1]
    feat = w_fe.shape[1]

    # ---- HW chunking: lane-aligned chunk size; pad HW (with zeros) so it divides evenly.
    hw_tile = min(_ceil_to(HW, LANE), _ceil_to(max_hw_tile, LANE))
    hw_pad = _ceil_to(HW, hw_tile)
    num_chunks = hw_pad // hw_tile

    # ---- free re-layout: channels on sublanes, H*W on lanes (no NCHW->NHWC HBM transpose copy).
    x_flat = x_nchw.reshape(N, C, HW).astype(jnp.float32)
    if hw_pad != HW:
        x_flat = jnp.pad(x_flat, ((0, 0), (0, 0), (0, hw_pad - HW)))

    # ---- tiny shared per-position table: CoordConv maps + valid(=bias) row; padded columns are zero,
    #      so padded pixels produce ReLU(0)=0 and do not pollute the pooled mean.
    lin_h = jnp.linspace(-1.0, 1.0, H, dtype=jnp.float32)
    lin_w = jnp.linspace(-1.0, 1.0, W, dtype=jnp.float32)
    coord_h = jnp.broadcast_to(lin_h[:, None], (H, W)).reshape(HW)
    coord_w = jnp.broadcast_to(lin_w[None, :], (H, W)).reshape(HW)
    extras = jnp.stack([coord_h, coord_w, jnp.ones((HW,), jnp.float32)], axis=0)   # (3, HW)
    if hw_pad != HW:
        extras = jnp.pad(extras, ((0, 0), (0, hw_pad - HW)))

    # ---- fused conv weight [W_img | W_coord | b_fe]: CoordConv concat folded algebraically.
    w_all = jnp.concatenate([jnp.transpose(w_fe), b_fe[:, None]], axis=1).astype(jnp.float32)  # (FEAT, C+3)
    bfc_row = b_fc.reshape(1, OUT).astype(jnp.float32)

    feat_blk = FEAT_BLK if feat % FEAT_BLK == 0 else feat
    kernel = _make_encoder_kernel(hw_tile, 1.0 / float(HW), feat, feat_blk)

    out = pl.pallas_call(
        kernel,
        out_shape=jax.ShapeDtypeStruct((N, 1, OUT), jnp.float32),
        grid_spec=pltpu.PrefetchScalarGridSpec(
            num_scalar_prefetch=0,
            grid=(N, num_chunks),
            in_specs=[
                pl.BlockSpec((1, C, hw_tile), lambda n, h: (n, 0, h)),
                pl.BlockSpec((3, hw_tile), lambda n, h: (0, h)),
                pl.BlockSpec((feat, C + 3), lambda n, h: (0, 0)),
                pl.BlockSpec((feat, OUT), lambda n, h: (0, 0)),
                pl.BlockSpec((1, OUT), lambda n, h: (0, 0)),
            ],
            out_specs=pl.BlockSpec((1, 1, OUT), lambda n, h: (n, 0, 0)),
            scratch_shapes=[pltpu.VMEM((feat, LANE), jnp.float32)],
        ),
        compiler_params=pltpu.CompilerParams(
            dimension_semantics=("parallel", "arbitrary"),
            vmem_limit_bytes=32 * 1024 * 1024,
        ),
    )(x_flat, extras, w_all, w_fc.astype(jnp.float32), bfc_row)

    return out.reshape(N, OUT)


# ----------------------------- pure-JAX reference -----------------------------
def encoder_reference(x_nchw, w_fe, b_fe, w_fc, b_fc):
    N, C, H, W = x_nchw.shape
    lin_h = jnp.linspace(-1.0, 1.0, H, dtype=x_nchw.dtype)[:, None]
    lin_w = jnp.linspace(-1.0, 1.0, W, dtype=x_nchw.dtype)[None, :]
    coord = jnp.stack([jnp.broadcast_to(lin_h, (H, W)),
                       jnp.broadcast_to(lin_w, (H, W))], axis=0)[None]
    x_cc = jnp.concatenate([x_nchw, jnp.broadcast_to(coord, (N, 2, H, W))], axis=1)
    x_flat = jnp.transpose(x_cc, (0, 2, 3, 1)).reshape(N, H * W, C + 2)
    feat = jnp.maximum(x_flat @ w_fe + b_fe[None, None, :], 0.0)   # (N, HW, 512)
    pooled = feat.mean(axis=1)                                     # (N, 512)
    return pooled @ w_fc + b_fc[None, :]                           # (N, OUT)


# ----------------------------------- main --------------------------------------
if __name__ == "__main__":
    N, C, H, W = 2, 4, 16, 16
    OUT_DIM = 32
    Cin = C + 2

    key = jax.random.PRNGKey(0)
    k_x, k_wfe, k_bfe, k_wfc, k_bfc = jax.random.split(key, 5)

    x = jax.random.normal(k_x, (N, C, H, W), dtype=jnp.float32)

    # deterministic synthetic parameters
    w_fe = jax.random.normal(k_wfe, (Cin, FEAT), dtype=jnp.float32) * 0.1
    b_fe = jax.random.normal(k_bfe, (FEAT,), dtype=jnp.float32) * 0.01
    w_fc = jax.random.normal(k_wfc, (FEAT, OUT_DIM), dtype=jnp.float32) * 0.05
    b_fc = jax.random.normal(k_bfc, (OUT_DIM,), dtype=jnp.float32) * 0.01

    out = jax.block_until_ready(encoder_forward(x, w_fe, b_fe, w_fc, b_fc))
    ref = jax.block_until_ready(encoder_reference(x, w_fe, b_fe, w_fc, b_fc))
    np.testing.assert_allclose(np.asarray(out), np.asarray(ref), rtol=1e-4, atol=1e-5)

    print("KERNEL_OK")
</pallas_src>

<mosaic_0001>
module attributes {stable_mosaic.version = 11 : i64} {
  func.func @kernel(%arg0: i32, %arg1: i32, %arg2: memref<1x4x256xf32, #tpu.memory_space<vmem>>, %arg3: memref<3x256xf32, #tpu.memory_space<vmem>>, %arg4: memref<512x7xf32, #tpu.memory_space<vmem>>, %arg5: memref<512x32xf32, #tpu.memory_space<vmem>>, %arg6: memref<1x32xf32, #tpu.memory_space<vmem>>, %arg7: memref<1x1x32xf32, #tpu.memory_space<vmem>>, %arg8: memref<512x128xf32, #tpu.memory_space<vmem>>) attributes {dimension_semantics = [#tpu.dimension_semantics<parallel>, #tpu.dimension_semantics<arbitrary>], iteration_bounds = array<i64: 2, 1>, scalar_prefetch = 0 : i64, scratch_operands = 1 : i64, tpu.core_type = #tpu.core_type<tc>, window_params = [{transform_indices = @transform_0, window_bounds = array<i64: 1, 4, 256>}, {transform_indices = @transform_1, window_bounds = array<i64: 3, 256>}, {pipeline_mode = #tpu.pipeline_mode<synchronous>, transform_indices = @transform_2, window_bounds = array<i64: 512, 7>}, {pipeline_mode = #tpu.pipeline_mode<synchronous>, transform_indices = @transform_3, window_bounds = array<i64: 512, 32>}, {pipeline_mode = #tpu.pipeline_mode<synchronous>, transform_indices = @transform_4, window_bounds = array<i64: 1, 32>}, {transform_indices = @transform_5, window_bounds = array<i64: 1, 1, 32>}]} {
    %c0_i32 = arith.constant 0 : i32
    %0 = arith.cmpi eq, %arg1, %c0_i32 : i32
    %1 = arith.extui %0 : i1 to i32
    %c0_i32_0 = arith.constant 0 : i32
    %2 = arith.cmpi ne, %1, %c0_i32_0 : i32
    scf.if %2 {
      %cst_35 = arith.constant 0.000000e+00 : f32
      %50 = vector.broadcast %cst_35 : f32 to vector<512x128xf32>
      %c0_36 = arith.constant 0 : index
      %c0_37 = arith.constant 0 : index
      %51 = vector.load %arg8[%c0_36, %c0_37] : memref<512x128xf32, #tpu.memory_space<vmem>>, vector<512x128xf32>
      tpu.vector_store %arg8[%c0_36, %c0_37], %50 {strides = array<i32>} : memref<512x128xf32, #tpu.memory_space<vmem>>, vector<512x128xf32>,
    } else {
    }
    %c0 = arith.constant 0 : index
    %c0_1 = arith.constant 0 : index
    %c0_2 = arith.constant 0 : index
    %3 = vector.load %arg2[%c0, %c0_1, %c0_2] : memref<1x4x256xf32, #tpu.memory_space<vmem>>, vector<1x4x256xf32>
    %4 = vector.shape_cast %3 : vector<1x4x256xf32> to vector<4x256xf32>
    %c0_3 = arith.constant 0 : index
    %c0_4 = arith.constant 0 : index
    %5 = vector.load %arg3[%c0_3, %c0_4] : memref<3x256xf32, #tpu.memory_space<vmem>>, vector<3x256xf32>
    %6 = tpu.concatenate %4, %5 in 0 : vector<4x256xf32>, vector<3x256xf32> -> vector<7x256xf32>
    %c0_5 = arith.constant 0 : index
    %c0_6 = arith.constant 0 : index
    %7 = vector.load %arg4[%c0_5, %c0_6] : memref<512x7xf32, #tpu.memory_space<vmem>>, vector<128x7xf32>
    %cst = arith.constant dense<0.000000e+00> : vector<128x256xf32>
    %8 = tpu.matmul %7, %6, %cst {dimension_numbers = #tpu.dot_dimension_numbers<[1], [0], [0], [1], [0, 0, 1, 1], [], []>} : vector<128x7xf32>, vector<7x256xf32>, vector<128x256xf32> -> vector<128x256xf32>
    %cst_7 = arith.constant 0.000000e+00 : f32
    %9 = vector.broadcast %cst_7 : f32 to vector<128x256xf32>
    %10 = arith.maximumf %8, %9 : vector<128x256xf32>
    %11 = vector.extract_strided_slice %10 {offsets = [0, 0], sizes = [128, 128], strides = [1, 1]} : vector<128x256xf32> to vector<128x128xf32>
    %12 = vector.extract_strided_slice %10 {offsets = [0, 128], sizes = [128, 128], strides = [1, 1]} : vector<128x256xf32> to vector<128x128xf32>
    %13 = arith.addf %11, %12 : vector<128x128xf32>
    %c0_8 = arith.constant 0 : index
    %c0_9 = arith.constant 0 : index
    %14 = vector.load %arg8[%c0_8, %c0_9] : memref<512x128xf32, #tpu.memory_space<vmem>>, vector<128x128xf32>
    %15 = arith.addf %14, %13 : vector<128x128xf32>
    %c0_10 = arith.constant 0 : index
    %c0_11 = arith.constant 0 : index
    %16 = vector.load %arg8[%c0_10, %c0_11] : memref<512x128xf32, #tpu.memory_space<vmem>>, vector<128x128xf32>
    tpu.vector_store %arg8[%c0_10, %c0_11], %15 {strides = array<i32>} : memref<512x128xf32, #tpu.memory_space<vmem>>, vector<128x128xf32>,
    %c128 = arith.constant 128 : index
    %c0_12 = arith.constant 0 : index
    %17 = vector.load %arg4[%c128, %c0_12] : memref<512x7xf32, #tpu.memory_space<vmem>>, vector<128x7xf32>
    %cst_13 = arith.constant dense<0.000000e+00> : vector<128x256xf32>
    %18 = tpu.matmul %17, %6, %cst_13 {dimension_numbers = #tpu.dot_dimension_numbers<[1], [0], [0], [1], [0, 0, 1, 1], [], []>} : vector<128x7xf32>, vector<7x256xf32>, vector<128x256xf32> -> vector<128x256xf32>
    %cst_14 = arith.constant 0.000000e+00 : f32
    %19 = vector.broadcast %cst_14 : f32 to vector<128x256xf32>
    %20 = arith.maximumf %18, %19 : vector<128x256xf32>
    %21 = vector.extract_strided_slice %20 {offsets = [0, 0], sizes = [128, 128], strides = [1, 1]} : vector<128x256xf32> to vector<128x128xf32>
    %22 = vector.extract_strided_slice %20 {offsets = [0, 128], sizes = [128, 128], strides = [1, 1]} : vector<128x256xf32> to vector<128x128xf32>
    %23 = arith.addf %21, %22 : vector<128x128xf32>
    %c128_15 = arith.constant 128 : index
    %c0_16 = arith.constant 0 : index
    %24 = vector.load %arg8[%c128_15, %c0_16] : memref<512x128xf32, #tpu.memory_space<vmem>>, vector<128x128xf32>
    %25 = arith.addf %24, %23 : vector<128x128xf32>
    %c128_17 = arith.constant 128 : index
    %c0_18 = arith.constant 0 : index
    %26 = vector.load %arg8[%c128_17, %c0_18] : memref<512x128xf32, #tpu.memory_space<vmem>>, vector<128x128xf32>
    tpu.vector_store %arg8[%c128_17, %c0_18], %25 {strides = array<i32>} : memref<512x128xf32, #tpu.memory_space<vmem>>, vector<128x128xf32>,
    %c256 = arith.constant 256 : index
    %c0_19 = arith.constant 0 : index
    %27 = vector.load %arg4[%c256, %c0_19] : memref<512x7xf32, #tpu.memory_space<vmem>>, vector<128x7xf32>
    %cst_20 = arith.constant dense<0.000000e+00> : vector<128x256xf32>
    %28 = tpu.matmul %27, %6, %cst_20 {dimension_numbers = #tpu.dot_dimension_numbers<[1], [0], [0], [1], [0, 0, 1, 1], [], []>} : vector<128x7xf32>, vector<7x256xf32>, vector<128x256xf32> -> vector<128x256xf32>
    %cst_21 = arith.constant 0.000000e+00 : f32
    %29 = vector.broadcast %cst_21 : f32 to vector<128x256xf32>
    %30 = arith.maximumf %28, %29 : vector<128x256xf32>
    %31 = vector.extract_strided_slice %30 {offsets = [0, 0], sizes = [128, 128], strides = [1, 1]} : vector<128x256xf32> to vector<128x128xf32>
    %32 = vector.extract_strided_slice %30 {offsets = [0, 128], sizes = [128, 128], strides = [1, 1]} : vector<128x256xf32> to vector<128x128xf32>
    %33 = arith.addf %31, %32 : vector<128x128xf32>
    %c256_22 = arith.constant 256 : index
    %c0_23 = arith.constant 0 : index
    %34 = vector.load %arg8[%c256_22, %c0_23] : memref<512x128xf32, #tpu.memory_space<vmem>>, vector<128x128xf32>
    %35 = arith.addf %34, %33 : vector<128x128xf32>
    %c256_24 = arith.constant 256 : index
    %c0_25 = arith.constant 0 : index
    %36 = vector.load %arg8[%c256_24, %c0_25] : memref<512x128xf32, #tpu.memory_space<vmem>>, vector<128x128xf32>
    tpu.vector_store %arg8[%c256_24, %c0_25], %35 {strides = array<i32>} : memref<512x128xf32, #tpu.memory_space<vmem>>, vector<128x128xf32>,
    %c384 = arith.constant 384 : index
    %c0_26 = arith.constant 0 : index
    %37 = vector.load %arg4[%c384, %c0_26] : memref<512x7xf32, #tpu.memory_space<vmem>>, vector<128x7xf32>
    %cst_27 = arith.constant dense<0.000000e+00> : vector<128x256xf32>
    %38 = tpu.matmul %37, %6, %cst_27 {dimension_numbers = #tpu.dot_dimension_numbers<[1], [0], [0], [1], [0, 0, 1, 1], [], []>} : vector<128x7xf32>, vector<7x256xf32>, vector<128x256xf32> -> vector<128x256xf32>
    %cst_28 = arith.constant 0.000000e+00 : f32
    %39 = vector.broadcast %cst_28 : f32 to vector<128x256xf32>
    %40 = arith.maximumf %38, %39 : vector<128x256xf32>
    %41 = vector.extract_strided_slice %40 {offsets = [0, 0], sizes = [128, 128], strides = [1, 1]} : vector<128x256xf32> to vector<128x128xf32>
    %42 = vector.extract_strided_slice %40 {offsets = [0, 128], sizes = [128, 128], strides = [1, 1]} : vector<128x256xf32> to vector<128x128xf32>
    %43 = arith.addf %41, %42 : vector<128x128xf32>
    %c384_29 = arith.constant 384 : index
    %c0_30 = arith.constant 0 : index
    %44 = vector.load %arg8[%c384_29, %c0_30] : memref<512x128xf32, #tpu.memory_space<vmem>>, vector<128x128xf32>
    %45 = arith.addf %44, %43 : vector<128x128xf32>
    %c384_31 = arith.constant 384 : index
    %c0_32 = arith.constant 0 : index
    %46 = vector.load %arg8[%c384_31, %c0_32] : memref<512x128xf32, #tpu.memory_space<vmem>>, vector<128x128xf32>
    tpu.vector_store %arg8[%c384_31, %c0_32], %45 {strides = array<i32>} : memref<512x128xf32, #tpu.memory_space<vmem>>, vector<128x128xf32>,
    %c0_i32_33 = arith.constant 0 : i32
    %47 = arith.cmpi eq, %arg1, %c0_i32_33 : i32
    %48 = arith.extui %47 : i1 to i32
    %c0_i32_34 = arith.constant 0 : i32
    %49 = arith.cmpi ne, %48, %c0_i32_34 : i32
    scf.if %49 {
      %c0_35 = arith.constant 0 : index
      %c0_36 = arith.constant 0 : index
      %50 = vector.load %arg8[%c0_35, %c0_36] : memref<512x128xf32, #tpu.memory_space<vmem>>, vector<512x128xf32>
      %cst_37 = arith.constant dense<0.000000e+00> : vector<512xf32>
      %51 = vector.multi_reduction <add>, %50, %cst_37 [1] : vector<512x128xf32> to vector<512xf32>
      %52 = vector.shape_cast %51 : vector<512xf32> to vector<512x1xf32>
      %cst_38 = arith.constant 3.906250e-03 : f32
      %53 = vector.broadcast %cst_38 : f32 to vector<512x1xf32>
      %54 = arith.mulf %52, %53 : vector<512x1xf32>
      %c0_39 = arith.constant 0 : index
      %c0_40 = arith.constant 0 : index
      %55 = vector.load %arg5[%c0_39, %c0_40] : memref<512x32xf32, #tpu.memory_space<vmem>>, vector<512x32xf32>
      %56 = vector.broadcast %54 : vector<512x1xf32> to vector<512x32xf32>
      %57 = arith.mulf %56, %55 : vector<512x32xf32>
      %cst_41 = arith.constant dense<0.000000e+00> : vector<32xf32>
      %58 = vector.multi_reduction <add>, %57, %cst_41 [0] : vector<512x32xf32> to vector<32xf32>
      %59 = vector.shape_cast %58 : vector<32xf32> to vector<1x32xf32>
      %c0_42 = arith.constant 0 : index
      %c0_43 = arith.constant 0 : index
      %60 = vector.load %arg6[%c0_42, %c0_43] : memref<1x32xf32, #tpu.memory_space<vmem>>, vector<1x32xf32>
      %61 = arith.addf %59, %60 : vector<1x32xf32>
      %c0_44 = arith.constant 0 : index
      %c0_45 = arith.constant 0 : index
      %c0_46 = arith.constant 0 : index
      %62 = vector.load %arg7[%c0_44, %c0_45, %c0_46] : memref<1x1x32xf32, #tpu.memory_space<vmem>>, vector<1x1x32xf32>
      %63 = vector.shape_cast %62 : vector<1x1x32xf32> to vector<1x32xf32>
      %64 = vector.shape_cast %61 : vector<1x32xf32> to vector<1x1x32xf32>
      tpu.vector_store %arg7[%c0_44, %c0_45, %c0_46], %64 {strides = array<i32>} : memref<1x1x32xf32, #tpu.memory_space<vmem>>, vector<1x1x32xf32>,
    } else {
    }
    return
  }
  func.func @transform_0(%arg0: i32, %arg1: i32) -> (i32, i32, i32) {
    %c0_i32 = arith.constant 0 : i32
    %c0_i32_0 = arith.constant 0 : i32
    return %arg0, %c0_i32, %arg1 : i32, i32, i32
  }
  func.func @transform_1(%arg0: i32, %arg1: i32) -> (i32, i32) {
    %c0_i32 = arith.constant 0 : i32
    %c0_i32_0 = arith.constant 0 : i32
    return %c0_i32, %arg1 : i32, i32
  }
  func.func @transform_2(%arg0: i32, %arg1: i32) -> (i32, i32) {
    %c0_i32 = arith.constant 0 : i32
    %c0_i32_0 = arith.constant 0 : i32
    %c0_i32_1 = arith.constant 0 : i32
    return %c0_i32, %c0_i32_0 : i32, i32
  }
  func.func @transform_3(%arg0: i32, %arg1: i32) -> (i32, i32) {
    %c0_i32 = arith.constant 0 : i32
    %c0_i32_0 = arith.constant 0 : i32
    %c0_i32_1 = arith.constant 0 : i32
    return %c0_i32, %c0_i32_0 : i32, i32
  }
  func.func @transform_4(%arg0: i32, %arg1: i32) -> (i32, i32) {
    %c0_i32 = arith.constant 0 : i32
    %c0_i32_0 = arith.constant 0 : i32
    %c0_i32_1 = arith.constant 0 : i32
    return %c0_i32, %c0_i32_0 : i32, i32
  }
  func.func @transform_5(%arg0: i32, %arg1: i32) -> (i32, i32, i32) {
    %c0_i32 = arith.constant 0 : i32
    %c0_i32_0 = arith.constant 0 : i32
    %c0_i32_1 = arith.constant 0 : i32
    return %arg0, %c0_i32, %c0_i32_0 : i32, i32, i32
  }
}

</mosaic_0001>

<llo_original>
// kernel: tpu_custom_call.1
$region0: #{tpu_custom_call.1}
  #allocation0 [shape = 'u32[]', space=smem, size = 0x4, offset = 0x4, fixed_abs, tag = 'smem constant byte address 0x4 - core index']
  #allocation1 [shape = 'u32[144,128]{1,0:T(1,128)}', space=vmem, size = 0x12000, scoped, tag = 'internal scratch']
  #allocation2 [shape = 'f32[512,128]{1,0:T(8,128)}', space=vmem, size = 0x40000, scoped, tag = 'scratch operand']
  %s0 = inlined_call_operand.vmem [shape: f32[2,4,256], index: 0, kind: input, shape index: {}]
  %s1 = inlined_call_operand.vmem [shape: f32[3,256], index: 1, kind: input, shape index: {}]
  %s2 = inlined_call_operand.vmem [shape: f32[512,7], index: 2, kind: input, shape index: {}]
  %s3 = inlined_call_operand.vmem [shape: f32[512,32], index: 3, kind: input, shape index: {}]
  %s4 = inlined_call_operand.vmem [shape: f32[1,32], index: 4, kind: input, shape index: {}]
  %s5 = inlined_call_operand.hbm [shape: f32[2,1,32], index: 5, kind: output, shape index: {}]
  %s6 = sld [smem:[#allocation0]]
  $region61: #{tpu_custom_call.1} parent=0
    _
  %s8 = ssub.s32 1, %s6
  %s9 = scalar_select 0, %s8, %s6
  $region1: #{tpu_custom_call.1} parent=0
    #allocation3 [shape = 'u8[1024]{0}', space=vmem, size = 0x400, scoped, tag = 'output window, operand 0']
    #allocation4 [shape = 's32[2]{0}', space=sflag, size = 0x8, scoped, tag = 'scoped memory for tpu_custom_call.1']
    %10 = vsyncpa [#allocation4], 0
    %s11 = scalar_lea.sflag [#allocation4], 1
    %12 = vsyncpa %s11, 0
    loop: start=0, step=1, limit=4
    $region2: #{tpu_custom_call.1} parent=1 // loop_pre_header
      _
    $region3: #{tpu_custom_call.1} parent=1 // loop_header
      %s14 = sphi 0, %s18
      %p15 = scmp.ge.s32.totalorder %s14, 4
      %s21 = sphi 0, %s33
      %s22 = sphi 0, %s29
      %s23 = sphi 0, %s21
      %s24 = sphi 0, %s22
      %s25 = sphi 0, %s23
      %s26 = sphi 0, %s24
      %s38 = sphi 0, %s40
      %s41 = sphi 0, %s38
      %s42 = sphi 0, %s41
      %s58 = sphi 0, %s42
      %s64 = sphi 0, %s66
      %s67 = sphi 0, %s64
      %s68 = sphi 0, %s67
      %s84 = sphi 0, %s68
      %s88 = sphi 0, %s88
      %s90 = sphi 0, %s88
      %s91 = sphi 0, %s90
      %s105 = sphi 0, %s91
      %s109 = sphi 0, %s109
      %s111 = sphi 0, %s109
      %s112 = sphi 0, %s111
      %s126 = sphi 0, %s112
      %s130 = sphi 0, %s130
      %s132 = sphi 0, %s130
      %s133 = sphi 0, %s132
      %s147 = sphi 0, %s133
      %s153 = sphi 0, %s155
      %s156 = sphi 0, %s153
      %s157 = sphi 0, %s156
      %s173 = sphi 0, %s157
    $region4: #{tpu_custom_call.1} parent=1 // loop_header_branch
      %17 = sbr.rel (%p15) target = $region8
    $region5: #{tpu_custom_call.1} parent=1 // loop_body
      %s19 = ssub.s32 %s14, 1
      %s20 = ssub.s32 %s14, 2
      %s27 = sadd.s32 1, %s22
      %p28 = scmp.ge.s32.totalorder %s27, 1
      %s29 = scalar_select %p28, 0, %s27
      %s30 = sadd.s32 1, %s21
      %s31 = scalar_select %p28, %s30, %s21
      %p32 = scmp.ge.s32.totalorder %s31, 2
      %s33 = scalar_select %p32, 0, %s31
      %s34 = ssub.s32 %s21, %s33
      %s35 = ssub.s32 %s22, %s29
      %s36 = sor.u32 %s34, %s35
      %p37 = scmp.eq.s32.totalorder %s36, 0
      %s39 = sadd.s32 %s38, 1
      %s40 = scalar_select %p37, %s38, %s39
      %p43 = pneg %p37
      %p44 = scmp.eq.s32.totalorder %s14, 1
      %p45 = por %p43, %p44
      %p46 = scmp.ne.s32.totalorder %s38, %s41
      %p47 = scmp.eq.s32.totalorder %s14, 0
      %p48 = por %p46, %p47
      %p49 = scmp.ne.s32.totalorder %s38, %s41
      %p50 = scmp.eq.s32.totalorder %s19, 1
      %p51 = por %p49, %p50
      %p52 = scmp.ne.s32.totalorder %s41, %s42
      %p53 = scmp.eq.s32.totalorder %s19, 0
      %p54 = por %p52, %p53
      %p55 = scmp.ne.s32.totalorder %s41, %s42
      %p56 = scmp.eq.s32.totalorder %s20, 1
      %p57 = por %p55, %p56
      %p59 = scmp.ne.s32.totalorder %s42, %s58
      %p60 = scmp.eq.s32.totalorder %s20, 0
      %p61 = por %p59, %p60
      %s62 = ssub.s32 %s22, %s29
      %p63 = scmp.eq.s32.totalorder %s62, 0
      %s65 = sadd.s32 %s64, 1
      %s66 = scalar_select %p63, %s64, %s65
      %p69 = pneg %p63
      %p70 = scmp.eq.s32.totalorder %s14, 1
      %p71 = por %p69, %p70
      %p72 = scmp.ne.s32.totalorder %s64, %s67
      %p73 = scmp.eq.s32.totalorder %s14, 0
      %p74 = por %p72, %p73
      %p75 = scmp.ne.s32.totalorder %s64, %s67
      %p76 = scmp.eq.s32.totalorder %s19, 1
      %p77 = por %p75, %p76
      %p78 = scmp.ne.s32.totalorder %s67, %s68
      %p79 = scmp.eq.s32.totalorder %s19, 0
      %p80 = por %p78, %p79
      %p81 = scmp.ne.s32.totalorder %s67, %s68
      %p82 = scmp.eq.s32.totalorder %s20, 1
      %p83 = por %p81, %p82
      %p85 = scmp.ne.s32.totalorder %s68, %s84
      %p86 = scmp.eq.s32.totalorder %s20, 0
      %p87 = por %p85, %p86
      %s89 = sadd.s32 %s88, 1
      %p92 = scmp.eq.s32.totalorder %s14, 1
      %p93 = scmp.ne.s32.totalorder %s88, %s90
      %p94 = scmp.eq.s32.totalorder %s14, 0
      %p95 = por %p93, %p94
      %p96 = scmp.ne.s32.totalorder %s88, %s90
      %p97 = scmp.eq.s32.totalorder %s19, 1
      %p98 = por %p96, %p97
      %p99 = scmp.ne.s32.totalorder %s90, %s91
      %p100 = scmp.eq.s32.totalorder %s19, 0
      %p101 = por %p99, %p100
      %p102 = scmp.ne.s32.totalorder %s90, %s91
      %p103 = scmp.eq.s32.totalorder %s20, 1
      %p104 = por %p102, %p103
      %p106 = scmp.ne.s32.totalorder %s91, %s105
      %p107 = scmp.eq.s32.totalorder %s20, 0
      %p108 = por %p106, %p107
      %s110 = sadd.s32 %s109, 1
      %p113 = scmp.eq.s32.totalorder %s14, 1
      %p114 = scmp.ne.s32.totalorder %s109, %s111
      %p115 = scmp.eq.s32.totalorder %s14, 0
      %p116 = por %p114, %p115
      %p117 = scmp.ne.s32.totalorder %s109, %s111
      %p118 = scmp.eq.s32.totalorder %s19, 1
      %p119 = por %p117, %p118
      %p120 = scmp.ne.s32.totalorder %s111, %s112
      %p121 = scmp.eq.s32.totalorder %s19, 0
      %p122 = por %p120, %p121
      %p123 = scmp.ne.s32.totalorder %s111, %s112
      %p124 = scmp.eq.s32.totalorder %s20, 1
      %p125 = por %p123, %p124
      %p127 = scmp.ne.s32.totalorder %s112, %s126
      %p128 = scmp.eq.s32.totalorder %s20, 0
      %p129 = por %p127, %p128
      %s131 = sadd.s32 %s130, 1
      %p134 = scmp.eq.s32.totalorder %s14, 1
      %p135 = scmp.ne.s32.totalorder %s130, %s132
      %p136 = scmp.eq.s32.totalorder %s14, 0
      %p137 = por %p135, %p136
      %p138 = scmp.ne.s32.totalorder %s130, %s132
      %p139 = scmp.eq.s32.totalorder %s19, 1
      %p140 = por %p138, %p139
      %p141 = scmp.ne.s32.totalorder %s132, %s133
      %p142 = scmp.eq.s32.totalorder %s19, 0
      %p143 = por %p141, %p142
      %p144 = scmp.ne.s32.totalorder %s132, %s133
      %p145 = scmp.eq.s32.totalorder %s20, 1
      %p146 = por %p144, %p145
      %p148 = scmp.ne.s32.totalorder %s133, %s147
      %p149 = scmp.eq.s32.totalorder %s20, 0
      %p150 = por %p148, %p149
      %s151 = ssub.s32 %s21, %s33
      %p152 = scmp.eq.s32.totalorder %s151, 0
      %s154 = sadd.s32 %s153, 1
      %s155 = scalar_select %p152, %s153, %s154
      %p158 = pneg %p152
      %p159 = scmp.eq.s32.totalorder %s14, 1
      %p160 = por %p158, %p159
      %p161 = scmp.ne.s32.totalorder %s153, %s156
      %p162 = scmp.eq.s32.totalorder %s14, 0
      %p163 = por %p161, %p162
      %p164 = scmp.ne.s32.totalorder %s153, %s156
      %p165 = scmp.eq.s32.totalorder %s19, 1
      %p166 = por %p164, %p165
      %p167 = scmp.ne.s32.totalorder %s156, %s157
      %p168 = scmp.eq.s32.totalorder %s19, 0
      %p169 = por %p167, %p168
      %p170 = scmp.ne.s32.totalorder %s156, %s157
      %p171 = scmp.eq.s32.totalorder %s20, 1
      %p172 = por %p170, %p171
      %p174 = scmp.ne.s32.totalorder %s157, %s173
      %p175 = scmp.eq.s32.totalorder %s20, 0
      %p176 = por %p174, %p175
      %p177 = scmp.le.s32.totalorder 1, %s14
      %p178 = scmp.lt.s32.totalorder %s14, 3
      %p179 = pnand %p177, %p178
      %p180 = pneg %p179
      // Predicated region
      $region9: #{tpu_custom_call.1} parent=5 // pred_check
        _
      $region10: #{tpu_custom_call.1} parent=5 // pred_check_branch
        %182 = sbr.rel (%p179) target = $region12
      $region11: #{tpu_custom_call.1} parent=5 // pred_region
        %s183 = ssub.s32 %s14, 1
        // Predicated region
        $region13: #{tpu_custom_call.1} parent=11 // pred_check
          %p184 = pneg %p80
        $region14: #{tpu_custom_call.1} parent=11 // pred_check_branch
          %186 = sbr.rel (%p184) target = $region16
        $region15: #{tpu_custom_call.1} parent=11 // pred_region
          %s187 = smul.u32 2, %s24
          %p188 = scmp.lt.s32.totalorder %s187, 1
          %s189 = scalar_select %p188, %s187, 1
          %s190 = smul.addr %s189, 4
          %s191 = scalar_lea.vmem %s1, %s190
          %s192 = smul.u32 2, %s24
        $region16: #{tpu_custom_call.1} parent=11 // pred_fallthru
          _
        // Predicated region
        $region17: #{tpu_custom_call.1} parent=11 // pred_check
          %p193 = pneg %p101
        $region18: #{tpu_custom_call.1} parent=11 // pred_check_branch
          %195 = sbr.rel (%p193) target = $region20
        $region19: #{tpu_custom_call.1} parent=11 // pred_region
          _
        $region20: #{tpu_custom_call.1} parent=11 // pred_fallthru
          _
        // Predicated region
        $region21: #{tpu_custom_call.1} parent=11 // pred_check
          %p196 = pneg %p122
        $region22: #{tpu_custom_call.1} parent=11 // pred_check_branch
          %198 = sbr.rel (%p196) target = $region24
        $region23: #{tpu_custom_call.1} parent=11 // pred_region
          _
        $region24: #{tpu_custom_call.1} parent=11 // pred_fallthru
          _
        // Predicated region
        $region25: #{tpu_custom_call.1} parent=11 // pred_check
          %p199 = pneg %p143
        $region26: #{tpu_custom_call.1} parent=11 // pred_check_branch
          %201 = sbr.rel (%p199) target = $region28
        $region27: #{tpu_custom_call.1} parent=11 // pred_region
          _
        $region28: #{tpu_custom_call.1} parent=11 // pred_fallthru
          _
      $region12: #{tpu_custom_call.1} parent=5 // pred_fallthru
        _
      %p202 = scmp.lt.s32.totalorder %s14, 2
      // Predicated region
      $region29: #{tpu_custom_call.1} parent=5 // pred_check
        %p203 = pneg %p202
      $region30: #{tpu_custom_call.1} parent=5 // pred_check_branch
        %205 = sbr.rel (%p203) target = $region32
      $region31: #{tpu_custom_call.1} parent=5 // pred_region
        // Predicated region
        $region33: #{tpu_custom_call.1} parent=31 // pred_check
          %p206 = pneg %p48
        $region34: #{tpu_custom_call.1} parent=31 // pred_check_branch
          %208 = sbr.rel (%p206) target = $region36
        $region35: #{tpu_custom_call.1} parent=31 // pred_region
          %s209 = smul.u32 2, %s22
          %p210 = scmp.lt.s32.totalorder %s21, 1
          %s211 = scalar_select %p210, %s21, 1
          %p212 = scmp.lt.s32.totalorder %s209, 1
          %s213 = scalar_select %p212, %s209, 1
          %s214 = smul.addr %s211, 2
          %s215 = sadd.s32 %s213, %s214
          %s216 = smul.addr %s215, 4
          %s217 = scalar_lea.vmem %s0, %s216
          %s218 = smul.u32 2, %s22
        $region36: #{tpu_custom_call.1} parent=31 // pred_fallthru
          _
      $region32: #{tpu_custom_call.1} parent=5 // pred_fallthru
        _
      %p219 = scmp.le.s32.totalorder 1, %s14
      %p220 = scmp.lt.s32.totalorder %s14, 3
      %p221 = pnand %p219, %p220
      %p222 = pneg %p221
      // Predicated region
      $region37: #{tpu_custom_call.1} parent=5 // pred_check
        _
      $region38: #{tpu_custom_call.1} parent=5 // pred_check_branch
        %224 = sbr.rel (%p221) target = $region40
      $region39: #{tpu_custom_call.1} parent=5 // pred_region
        %s225 = ssub.s32 %s14, 1
        %s226 = smul.u32 2, %s24
        %p227 = scmp.lt.s32.totalorder %s23, 1
        %s228 = scalar_select %p227, %s23, 1
        %p229 = scmp.lt.s32.totalorder %s226, 1
        %s230 = scalar_select %p229, %s226, 1
        %s231 = smul.addr %s228, 2
        %s232 = sadd.s32 %s230, %s231
        %s233 = smul.addr %s232, 4
        %s234 = scalar_lea.vmem %s0, %s233
        %p235 = pneg %p54
        %p236 = pneg %p51
        %s237 = smul.u32 2, %s24
        %p238 = scmp.lt.s32.totalorder %s237, 1
        %s239 = scalar_select %p238, %s237, 1
        %s240 = smul.addr %s239, 4
        %s241 = scalar_lea.vmem %s1, %s240
        %p242 = pneg %p80
        %p243 = pneg %p77
        %p244 = pneg %p101
        %p245 = pneg %p98
        %p246 = pneg %p122
        %p247 = pneg %p119
        %p248 = pneg %p143
        %p249 = pneg %p140
        %p250 = pneg %p169
        %p251 = pneg %p166
        %s252 = sand.u32 %s156, 1
        %s253 = scalar_lea.sflag [#allocation4], %s252
        %s254 = sand.u32 %s156, 1
        %s255 = scalar_lea.vmem [#allocation3], %s254
        %s256 = smul.u32 2, %s24
        %p257 = scmp.lt.s32.totalorder %s23, 1
        %s258 = scalar_select %p257, %s23, 1
        %p259 = scmp.lt.s32.totalorder %s256, 1
        %s260 = scalar_select %p259, %s256, 1
        %s261 = smul.addr %s258, 2
        %s262 = sadd.s32 %s260, %s261
        %s263 = smul.addr %s262, 4
        %s264 = scalar_lea.vmem %s0, %s263
        %s265 = smul.u32 2, %s24
        %s266 = smul.u32 2, %s24
        %p267 = scmp.lt.s32.totalorder %s266, 1
        %s268 = scalar_select %p267, %s266, 1
        %s269 = smul.addr %s268, 4
        %s270 = scalar_lea.vmem %s1, %s269
        %s271 = smul.u32 2, %s24
        %p272 = scmp.eq.s32.totalorder %s24, 0
        // Predicated region
        $region41: #{tpu_custom_call.1} parent=39 // pred_check
          %p273 = pneg %p272
        $region42: #{tpu_custom_call.1} parent=39 // pred_check_branch
          %275 = sbr.rel (%p273) target = $region44
        $region43: #{tpu_custom_call.1} parent=39 // pred_region
          %276 = vst [vmem:[#allocation2] sm:$0xff] 0.0
          %277 = vst [vmem:[#allocation2 + $0x8] sm:$0xff] 0.0
          %278 = vst [vmem:[#allocation2 + $0x10] sm:$0xff] 0.0
          %279 = vst [vmem:[#allocation2 + $0x18] sm:$0xff] 0.0
          %280 = vst [vmem:[#allocation2 + $0x20] sm:$0xff] 0.0
          %281 = vst [vmem:[#allocation2 + $0x28] sm:$0xff] 0.0
          %282 = vst [vmem:[#allocation2 + $0x30] sm:$0xff] 0.0
          %283 = vst [vmem:[#allocation2 + $0x38] sm:$0xff] 0.0
          %284 = vst [vmem:[#allocation2 + $0x40] sm:$0xff] 0.0
          %285 = vst [vmem:[#allocation2 + $0x48] sm:$0xff] 0.0
          %286 = vst [vmem:[#allocation2 + $0x50] sm:$0xff] 0.0
          %287 = vst [vmem:[#allocation2 + $0x58] sm:$0xff] 0.0
          %288 = vst [vmem:[#allocation2 + $0x60] sm:$0xff] 0.0
          %289 = vst [vmem:[#allocation2 + $0x68] sm:$0xff] 0.0
          %290 = vst [vmem:[#allocation2 + $0x70] sm:$0xff] 0.0
          %291 = vst [vmem:[#allocation2 + $0x78] sm:$0xff] 0.0
          %292 = vst [vmem:[#allocation2 + $0x80] sm:$0xff] 0.0
          %293 = vst [vmem:[#allocation2 + $0x88] sm:$0xff] 0.0
          %294 = vst [vmem:[#allocation2 + $0x90] sm:$0xff] 0.0
          %295 = vst [vmem:[#allocation2 + $0x98] sm:$0xff] 0.0
          %296 = vst [vmem:[#allocation2 + $0xa0] sm:$0xff] 0.0
          %297 = vst [vmem:[#allocation2 + $0xa8] sm:$0xff] 0.0
          %298 = vst [vmem:[#allocation2 + $0xb0] sm:$0xff] 0.0
          %299 = vst [vmem:[#allocation2 + $0xb8] sm:$0xff] 0.0
          %300 = vst [vmem:[#allocation2 + $0xc0] sm:$0xff] 0.0
          %301 = vst [vmem:[#allocation2 + $0xc8] sm:$0xff] 0.0
          %302 = vst [vmem:[#allocation2 + $0xd0] sm:$0xff] 0.0
          %303 = vst [vmem:[#allocation2 + $0xd8] sm:$0xff] 0.0
          %304 = vst [vmem:[#allocation2 + $0xe0] sm:$0xff] 0.0
          %305 = vst [vmem:[#allocation2 + $0xe8] sm:$0xff] 0.0
          %306 = vst [vmem:[#allocation2 + $0xf0] sm:$0xff] 0.0
          %307 = vst [vmem:[#allocation2 + $0xf8] sm:$0xff] 0.0
          %308 = vst [vmem:[#allocation2 + $0x100] sm:$0xff] 0.0
          %309 = vst [vmem:[#allocation2 + $0x108] sm:$0xff] 0.0
          %310 = vst [vmem:[#allocation2 + $0x110] sm:$0xff] 0.0
          %311 = vst [vmem:[#allocation2 + $0x118] sm:$0xff] 0.0
          %312 = vst [vmem:[#allocation2 + $0x120] sm:$0xff] 0.0
          %313 = vst [vmem:[#allocation2 + $0x128] sm:$0xff] 0.0
          %314 = vst [vmem:[#allocation2 + $0x130] sm:$0xff] 0.0
          %315 = vst [vmem:[#allocation2 + $0x138] sm:$0xff] 0.0
          %316 = vst [vmem:[#allocation2 + $0x140] sm:$0xff] 0.0
          %317 = vst [vmem:[#allocation2 + $0x148] sm:$0xff] 0.0
          %318 = vst [vmem:[#allocation2 + $0x150] sm:$0xff] 0.0
          %319 = vst [vmem:[#allocation2 + $0x158] sm:$0xff] 0.0
          %320 = vst [vmem:[#allocation2 + $0x160] sm:$0xff] 0.0
          %321 = vst [vmem:[#allocation2 + $0x168] sm:$0xff] 0.0
          %322 = vst [vmem:[#allocation2 + $0x170] sm:$0xff] 0.0
          %323 = vst [vmem:[#allocation2 + $0x178] sm:$0xff] 0.0
          %324 = vst [vmem:[#allocation2 + $0x180] sm:$0xff] 0.0
          %325 = vst [vmem:[#allocation2 + $0x188] sm:$0xff] 0.0
          %326 = vst [vmem:[#allocation2 + $0x190] sm:$0xff] 0.0
          %327 = vst [vmem:[#allocation2 + $0x198] sm:$0xff] 0.0
          %328 = vst [vmem:[#allocation2 + $0x1a0] sm:$0xff] 0.0
          %329 = vst [vmem:[#allocation2 + $0x1a8] sm:$0xff] 0.0
          %330 = vst [vmem:[#allocation2 + $0x1b0] sm:$0xff] 0.0
          %331 = vst [vmem:[#allocation2 + $0x1b8] sm:$0xff] 0.0
          %332 = vst [vmem:[#allocation2 + $0x1c0] sm:$0xff] 0.0
          %333 = vst [vmem:[#allocation2 + $0x1c8] sm:$0xff] 0.0
          %334 = vst [vmem:[#allocation2 + $0x1d0] sm:$0xff] 0.0
          %335 = vst [vmem:[#allocation2 + $0x1d8] sm:$0xff] 0.0
          %336 = vst [vmem:[#allocation2 + $0x1e0] sm:$0xff] 0.0
          %337 = vst [vmem:[#allocation2 + $0x1e8] sm:$0xff] 0.0
          %338 = vst [vmem:[#allocation2 + $0x1f0] sm:$0xff] 0.0
          %339 = vst [vmem:[#allocation2 + $0x1f8] sm:$0xff] 0.0
        $region44: #{tpu_custom_call.1} parent=39 // pred_fallthru
          _
        %v340 = vld [vmem:[%s264] sm:$0xff]
        %v341 = vld [vmem:[%s270] sm:$0x77]
        %v343 = vcombine.high %v340, %v340
        %v346 = vcombine.low %v341, %v341
        %vm348 = vcmask 1043456
        %v349 = vsel %vm348, %v340, %v346
        %v350 = vsel %vm348, %v343, %v341
        %v351 = vld [vmem:[%s2] sm:$0xff]
        %v352 = vld [vmem:[%s2 + $0x8] sm:$0xff]
        %v353 = vld [vmem:[%s2 + $0x10] sm:$0xff]
        %v354 = vld [vmem:[%s2 + $0x18] sm:$0xff]
        %v355 = vld [vmem:[%s2 + $0x20] sm:$0xff]
        %v356 = vld [vmem:[%s2 + $0x28] sm:$0xff]
        %v357 = vld [vmem:[%s2 + $0x30] sm:$0xff]
        %v358 = vld [vmem:[%s2 + $0x38] sm:$0xff]
        %v359 = vld [vmem:[%s2 + $0x40] sm:$0xff]
        %v360 = vld [vmem:[%s2 + $0x48] sm:$0xff]
        %v361 = vld [vmem:[%s2 + $0x50] sm:$0xff]
        %v362 = vld [vmem:[%s2 + $0x58] sm:$0xff]
        %v363 = vld [vmem:[%s2 + $0x60] sm:$0xff]
        %v364 = vld [vmem:[%s2 + $0x68] sm:$0xff]
        %v365 = vld [vmem:[%s2 + $0x70] sm:$0xff]
        %v366 = vld [vmem:[%s2 + $0x78] sm:$0xff]
        %vm367 = vcmask 56320
        %v369 = vsel %vm367, %v351, 0
        %v372 = vsel %vm367, %v352, 0
        %v375 = vsel %vm367, %v353, 0
        %v378 = vsel %vm367, %v354, 0
        %v381 = vsel %vm367, %v355, 0
        %v384 = vsel %vm367, %v356, 0
        %v387 = vsel %vm367, %v357, 0
        %v390 = vsel %vm367, %v358, 0
        %v393 = vsel %vm367, %v359, 0
        %v396 = vsel %vm367, %v360, 0
        %v399 = vsel %vm367, %v361, 0
        %v402 = vsel %vm367, %v362, 0
        %v405 = vsel %vm367, %v363, 0
        %v408 = vsel %vm367, %v364, 0
        %v411 = vsel %vm367, %v365, 0
        %v414 = vsel %vm367, %v366, 0
        %vm416 = vcmask 1046528
        %v418 = vsel %vm416, %v349, 0
        %v421 = vsel %vm416, %v350, 0
        %423 = vmatprep.subr.mxu0 %v421
        %424 = vmatpush1.msra.mxu0 %v418
        %425 = vmatprep.subr.mxu0 0.0
        %426 = vmatpush1.msra.mxu0 0.0
        %427 = vmatprep.subr.mxu0 0.0
        %428 = vmatpush1.msra.mxu0 0.0
        %429 = vmatprep.subr.mxu0 0.0
        %430 = vmatpush1.msra.mxu0 0.0
        %431 = vmatprep.subr.mxu0 0.0
        %432 = vmatpush1.msra.mxu0 0.0
        %433 = vmatprep.subr.mxu0 0.0
        %434 = vmatpush1.msra.mxu0 0.0
        %435 = vmatprep.subr.mxu0 0.0
        %436 = vmatpush1.msra.mxu0 0.0
        %437 = vmatprep.subr.mxu0 0.0
        %438 = vmatpush1.msra.mxu0 0.0
        %439 = vmatprep.subr.mxu0 0.0
        %440 = vmatpush1.msra.mxu0 0.0
        %441 = vmatprep.subr.mxu0 0.0
        %442 = vmatpush1.msra.mxu0 0.0
        %443 = vmatprep.subr.mxu0 0.0
        %444 = vmatpush1.msra.mxu0 0.0
        %445 = vmatprep.subr.mxu0 0.0
        %446 = vmatpush1.msra.mxu0 0.0
        %447 = vmatprep.subr.mxu0 0.0
        %448 = vmatpush1.msra.mxu0 0.0
        %449 = vmatprep.subr.mxu0 0.0
        %450 = vmatpush1.msra.mxu0 0.0
        %451 = vmatprep.subr.mxu0 0.0
        %452 = vmatpush1.msra.mxu0 0.0
        %453 = vmatprep.subr.mxu0 0.0
        %454 = vmatpush1.msra.mxu0 0.0
        %455 = vmatprep.subr.mxu0 0.0
        %456 = vmatpush1.msra.mxu0 0.0
        %457 = vmatprep.subr.mxu0 0.0
        %458 = vmatpush1.msra.mxu0 0.0
        %459 = vmatprep.subr.mxu0 0.0
        %460 = vmatpush1.msra.mxu0 0.0
        %461 = vmatprep.subr.mxu0 0.0
        %462 = vmatpush1.msra.mxu0 0.0
        %463 = vmatprep.subr.mxu0 0.0
        %464 = vmatpush1.msra.mxu0 0.0
        %465 = vmatprep.subr.mxu0 0.0
        %466 = vmatpush1.msra.mxu0 0.0
        %467 = vmatprep.subr.mxu0 0.0
        %468 = vmatpush1.msra.mxu0 0.0
        %469 = vmatprep.subr.mxu0 0.0
        %470 = vmatpush1.msra.mxu0 0.0
        %471 = vmatprep.subr.mxu0 0.0
        %472 = vmatpush1.msra.mxu0 0.0
        %473 = vmatprep.subr.mxu0 0.0
        %474 = vmatpush1.msra.mxu0 0.0
        %475 = vmatprep.subr.mxu0 0.0
        %476 = vmatpush1.msra.mxu0 0.0
        %477 = vmatprep.subr.mxu0 0.0
        %478 = vmatpush1.msra.mxu0 0.0
        %479 = vmatprep.subr.mxu0 0.0
        %480 = vmatpush1.msra.mxu0 0.0
        %481 = vmatprep.subr.mxu0 0.0
        %482 = vmatpush1.msra.mxu0 0.0
        %483 = vmatprep.subr.mxu0 0.0
        %484 = vmatpush1.msra.mxu0 0.0
        %485 = vmatprep.subr.mxu0 0.0
        %486 = vmatpush1.msra.mxu0 0.0
        %487 = vmatprep.mubr.f32.mxu0 0.0
        %488 = vmatmul.mubr.f32.gmra.mrb[0].mxu0 %v369
        %v489 = vpop.f32.mrb[0].mxu0
        %v490 = vadd.f32 0.0, %v489
        %v491 = vpop.f32.mrb[0].mxu0
        %v492 = vadd.f32 0.0, %v491
        %493 = vmatprep.mubr.f32.mxu0 0.0
        %494 = vmatmul.mubr.f32.gmra.mrb[0].mxu0 %v372
        %v495 = vpop.f32.mrb[0].mxu0
        %v496 = vadd.f32 0.0, %v495
        %v497 = vpop.f32.mrb[0].mxu0
        %v498 = vadd.f32 0.0, %v497
        %499 = vmatprep.mubr.f32.mxu0 0.0
        %500 = vmatmul.mubr.f32.gmra.mrb[0].mxu0 %v375
        %v501 = vpop.f32.mrb[0].mxu0
        %v502 = vadd.f32 0.0, %v501
        %v503 = vpop.f32.mrb[0].mxu0
        %v504 = vadd.f32 0.0, %v503
        %505 = vmatprep.mubr.f32.mxu0 0.0
        %506 = vmatmul.mubr.f32.gmra.mrb[0].mxu0 %v378
        %v507 = vpop.f32.mrb[0].mxu0
        %v508 = vadd.f32 0.0, %v507
        %v509 = vpop.f32.mrb[0].mxu0
        %v510 = vadd.f32 0.0, %v509
        %511 = vmatprep.mubr.f32.mxu0 0.0
        %512 = vmatmul.mubr.f32.gmra.mrb[0].mxu0 %v381
        %v513 = vpop.f32.mrb[0].mxu0
        %v514 = vadd.f32 0.0, %v513
        %v515 = vpop.f32.mrb[0].mxu0
        %v516 = vadd.f32 0.0, %v515
        %517 = vmatprep.mubr.f32.mxu0 0.0
        %518 = vmatmul.mubr.f32.gmra.mrb[0].mxu0 %v384
        %v519 = vpop.f32.mrb[0].mxu0
        %v520 = vadd.f32 0.0, %v519
        %v521 = vpop.f32.mrb[0].mxu0
        %v522 = vadd.f32 0.0, %v521
        %523 = vmatprep.mubr.f32.mxu0 0.0
        %524 = vmatmul.mubr.f32.gmra.mrb[0].mxu0 %v387
        %v525 = vpop.f32.mrb[0].mxu0
        %v526 = vadd.f32 0.0, %v525
        %v527 = vpop.f32.mrb[0].mxu0
        %v528 = vadd.f32 0.0, %v527
        %529 = vmatprep.mubr.f32.mxu0 0.0
        %530 = vmatmul.mubr.f32.gmra.mrb[0].mxu0 %v390
        %v531 = vpop.f32.mrb[0].mxu0
        %v532 = vadd.f32 0.0, %v531
        %v533 = vpop.f32.mrb[0].mxu0
        %v534 = vadd.f32 0.0, %v533
        %535 = vmatprep.mubr.f32.mxu0 0.0
        %536 = vmatmul.mubr.f32.gmra.mrb[0].mxu0 %v393
        %v537 = vpop.f32.mrb[0].mxu0
        %v538 = vadd.f32 0.0, %v537
        %v539 = vpop.f32.mrb[0].mxu0
        %v540 = vadd.f32 0.0, %v539
        %541 = vmatprep.mubr.f32.mxu0 0.0
        %542 = vmatmul.mubr.f32.gmra.mrb[0].mxu0 %v396
        %v543 = vpop.f32.mrb[0].mxu0
        %v544 = vadd.f32 0.0, %v543
        %v545 = vpop.f32.mrb[0].mxu0
        %v546 = vadd.f32 0.0, %v545
        %547 = vmatprep.mubr.f32.mxu0 0.0
        %548 = vmatmul.mubr.f32.gmra.mrb[0].mxu0 %v399
        %v549 = vpop.f32.mrb[0].mxu0
        %v550 = vadd.f32 0.0, %v549
        %v551 = vpop.f32.mrb[0].mxu0
        %v552 = vadd.f32 0.0, %v551
        %553 = vmatprep.mubr.f32.mxu0 0.0
        %554 = vmatmul.mubr.f32.gmra.mrb[0].mxu0 %v402
        %v555 = vpop.f32.mrb[0].mxu0
        %v556 = vadd.f32 0.0, %v555
        %v557 = vpop.f32.mrb[0].mxu0
        %v558 = vadd.f32 0.0, %v557
        %559 = vmatprep.mubr.f32.mxu0 0.0
        %560 = vmatmul.mubr.f32.gmra.mrb[0].mxu0 %v405
        %v561 = vpop.f32.mrb[0].mxu0
        %v562 = vadd.f32 0.0, %v561
        %v563 = vpop.f32.mrb[0].mxu0
        %v564 = vadd.f32 0.0, %v563
        %565 = vmatprep.mubr.f32.mxu0 0.0
        %566 = vmatmul.mubr.f32.gmra.mrb[0].mxu0 %v408
        %v567 = vpop.f32.mrb[0].mxu0
        %v568 = vadd.f32 0.0, %v567
        %v569 = vpop.f32.mrb[0].mxu0
        %v570 = vadd.f32 0.0, %v569
        %571 = vmatprep.mubr.f32.mxu0 0.0
        %572 = vmatmul.mubr.f32.gmra.mrb[0].mxu0 %v411
        %v573 = vpop.f32.mrb[0].mxu0
        %v574 = vadd.f32 0.0, %v573
        %v575 = vpop.f32.mrb[0].mxu0
        %v576 = vadd.f32 0.0, %v575
        %577 = vmatprep.mubr.f32.mxu0 0.0
        %578 = vmatmul.mubr.f32.gmra.mrb[0].mxu0 %v414
        %v579 = vpop.f32.mrb[0].mxu0
        %v580 = vadd.f32 0.0, %v579
        %v581 = vpop.f32.mrb[0].mxu0
        %v582 = vadd.f32 0.0, %v581
        %583 = vdwg.mxu0
        %v584 = vmax.f32 %v490, 0.0
        %v585 = vmax.f32 %v492, 0.0
        %v586 = vmax.f32 %v496, 0.0
        %v587 = vmax.f32 %v498, 0.0
        %v588 = vmax.f32 %v502, 0.0
        %v589 = vmax.f32 %v504, 0.0
        %v590 = vmax.f32 %v508, 0.0
        %v591 = vmax.f32 %v510, 0.0
        %v592 = vmax.f32 %v514, 0.0
        %v593 = vmax.f32 %v516, 0.0
        %v594 = vmax.f32 %v520, 0.0
        %v595 = vmax.f32 %v522, 0.0
        %v596 = vmax.f32 %v526, 0.0
        %v597 = vmax.f32 %v528, 0.0
        %v598 = vmax.f32 %v532, 0.0
        %v599 = vmax.f32 %v534, 0.0
        %v600 = vmax.f32 %v538, 0.0
        %v601 = vmax.f32 %v540, 0.0
        %v602 = vmax.f32 %v544, 0.0
        %v603 = vmax.f32 %v546, 0.0
        %v604 = vmax.f32 %v550, 0.0
        %v605 = vmax.f32 %v552, 0.0
        %v606 = vmax.f32 %v556, 0.0
        %v607 = vmax.f32 %v558, 0.0
        %v608 = vmax.f32 %v562, 0.0
        %v609 = vmax.f32 %v564, 0.0
        %v610 = vmax.f32 %v568, 0.0
        %v611 = vmax.f32 %v570, 0.0
        %v612 = vmax.f32 %v574, 0.0
        %v613 = vmax.f32 %v576, 0.0
        %v614 = vmax.f32 %v580, 0.0
        %v615 = vmax.f32 %v582, 0.0
        %v616 = vadd.f32 %v584, %v585
        %v617 = vadd.f32 %v586, %v587
        %v618 = vadd.f32 %v588, %v589
        %v619 = vadd.f32 %v590, %v591
        %v620 = vadd.f32 %v592, %v593
        %v621 = vadd.f32 %v594, %v595
        %v622 = vadd.f32 %v596, %v597
        %v623 = vadd.f32 %v598, %v599
        %v624 = vadd.f32 %v600, %v601
        %v625 = vadd.f32 %v602, %v603
        %v626 = vadd.f32 %v604, %v605
        %v627 = vadd.f32 %v606, %v607
        %v628 = vadd.f32 %v608, %v609
        %v629 = vadd.f32 %v610, %v611
        %v630 = vadd.f32 %v612, %v613
        %v631 = vadd.f32 %v614, %v615
        %v632 = vld [vmem:[#allocation2] sm:$0xff]
        %v633 = vld [vmem:[#allocation2 + $0x8] sm:$0xff]
        %v634 = vld [vmem:[#allocation2 + $0x10] sm:$0xff]
        %v635 = vld [vmem:[#allocation2 + $0x18] sm:$0xff]
        %v636 = vld [vmem:[#allocation2 + $0x20] sm:$0xff]
        %v637 = vld [vmem:[#allocation2 + $0x28] sm:$0xff]
        %v638 = vld [vmem:[#allocation2 + $0x30] sm:$0xff]
        %v639 = vld [vmem:[#allocation2 + $0x38] sm:$0xff]
        %v640 = vld [vmem:[#allocation2 + $0x40] sm:$0xff]
        %v641 = vld [vmem:[#allocation2 + $0x48] sm:$0xff]
        %v642 = vld [vmem:[#allocation2 + $0x50] sm:$0xff]
        %v643 = vld [vmem:[#allocation2 + $0x58] sm:$0xff]
        %v644 = vld [vmem:[#allocation2 + $0x60] sm:$0xff]
        %v645 = vld [vmem:[#allocation2 + $0x68] sm:$0xff]
        %v646 = vld [vmem:[#allocation2 + $0x70] sm:$0xff]
        %v647 = vld [vmem:[#allocation2 + $0x78] sm:$0xff]
        %v648 = vadd.f32 %v632, %v616
        %v649 = vadd.f32 %v633, %v617
        %v650 = vadd.f32 %v634, %v618
        %v651 = vadd.f32 %v635, %v619
        %v652 = vadd.f32 %v636, %v620
        %v653 = vadd.f32 %v637, %v621
        %v654 = vadd.f32 %v638, %v622
        %v655 = vadd.f32 %v639, %v623
        %v656 = vadd.f32 %v640, %v624
        %v657 = vadd.f32 %v641, %v625
        %v658 = vadd.f32 %v642, %v626
        %v659 = vadd.f32 %v643, %v627
        %v660 = vadd.f32 %v644, %v628
        %v661 = vadd.f32 %v645, %v629
        %v662 = vadd.f32 %v646, %v630
        %v663 = vadd.f32 %v647, %v631
        %664 = vst [vmem:[#allocation2] sm:$0xff] %v648
        %665 = vst [vmem:[#allocation2 + $0x8] sm:$0xff] %v649
        %666 = vst [vmem:[#allocation2 + $0x10] sm:$0xff] %v650
        %667 = vst [vmem:[#allocation2 + $0x18] sm:$0xff] %v651
        %668 = vst [vmem:[#allocation2 + $0x20] sm:$0xff] %v652
        %669 = vst [vmem:[#allocation2 + $0x28] sm:$0xff] %v653
        %670 = vst [vmem:[#allocation2 + $0x30] sm:$0xff] %v654
        %671 = vst [vmem:[#allocation2 + $0x38] sm:$0xff] %v655
        %672 = vst [vmem:[#allocation2 + $0x40] sm:$0xff] %v656
        %673 = vst [vmem:[#allocation2 + $0x48] sm:$0xff] %v657
        %674 = vst [vmem:[#allocation2 + $0x50] sm:$0xff] %v658
        %675 = vst [vmem:[#allocation2 + $0x58] sm:$0xff] %v659
        %676 = vst [vmem:[#allocation2 + $0x60] sm:$0xff] %v660
        %677 = vst [vmem:[#allocation2 + $0x68] sm:$0xff] %v661
        %678 = vst [vmem:[#allocation2 + $0x70] sm:$0xff] %v662
        %679 = vst [vmem:[#allocation2 + $0x78] sm:$0xff] %v663
        %v680 = vld [vmem:[%s2 + $0x80] sm:$0xff]
        %v681 = vld [vmem:[%s2 + $0x88] sm:$0xff]
        %v682 = vld [vmem:[%s2 + $0x90] sm:$0xff]
        %v683 = vld [vmem:[%s2 + $0x98] sm:$0xff]
        %v684 = vld [vmem:[%s2 + $0xa0] sm:$0xff]
        %v685 = vld [vmem:[%s2 + $0xa8] sm:$0xff]
        %v686 = vld [vmem:[%s2 + $0xb0] sm:$0xff]
        %v687 = vld [vmem:[%s2 + $0xb8] sm:$0xff]
        %v688 = vld [vmem:[%s2 + $0xc0] sm:$0xff]
        %v689 = vld [vmem:[%s2 + $0xc8] sm:$0xff]
        %v690 = vld [vmem:[%s2 + $0xd0] sm:$0xff]
        %v691 = vld [vmem:[%s2 + $0xd8] sm:$0xff]
        %v692 = vld [vmem:[%s2 + $0xe0] sm:$0xff]
        %v693 = vld [vmem:[%s2 + $0xe8] sm:$0xff]
        %v694 = vld [vmem:[%s2 + $0xf0] sm:$0xff]
        %v695 = vld [vmem:[%s2 + $0xf8] sm:$0xff]
        %v697 = vsel %vm367, %v680, 0
        %v700 = vsel %vm367, %v681, 0
        %v703 = vsel %vm367, %v682, 0
        %v706 = vsel %vm367, %v683, 0
        %v709 = vsel %vm367, %v684, 0
        %v712 = vsel %vm367, %v685, 0
        %v715 = vsel %vm367, %v686, 0
        %v718 = vsel %vm367, %v687, 0
        %v721 = vsel %vm367, %v688, 0
        %v724 = vsel %vm367, %v689, 0
        %v727 = vsel %vm367, %v690, 0
        %v730 = vsel %vm367, %v691, 0
        %v733 = vsel %vm367, %v692, 0
        %v736 = vsel %vm367, %v693, 0
        %v739 = vsel %vm367, %v694, 0
        %v742 = vsel %vm367, %v695, 0
        %744 = vmatprep.subr.mxu0 %v421
        %745 = vmatpush1.msra.mxu0 %v418
        %746 = vmatprep.subr.mxu0 0.0
        %747 = vmatpush1.msra.mxu0 0.0
        %748 = vmatprep.subr.mxu0 0.0
        %749 = vmatpush1.msra.mxu0 0.0
        %750 = vmatprep.subr.mxu0 0.0
        %751 = vmatpush1.msra.mxu0 0.0
        %752 = vmatprep.subr.mxu0 0.0
        %753 = vmatpush1.msra.mxu0 0.0
        %754 = vmatprep.subr.mxu0 0.0
        %755 = vmatpush1.msra.mxu0 0.0
        %756 = vmatprep.subr.mxu0 0.0
        %757 = vmatpush1.msra.mxu0 0.0
        %758 = vmatprep.subr.mxu0 0.0
        %759 = vmatpush1.msra.mxu0 0.0
        %760 = vmatprep.subr.mxu0 0.0
        %761 = vmatpush1.msra.mxu0 0.0
        %762 = vmatprep.subr.mxu0 0.0
        %763 = vmatpush1.msra.mxu0 0.0
        %764 = vmatprep.subr.mxu0 0.0
        %765 = vmatpush1.msra.mxu0 0.0
        %766 = vmatprep.subr.mxu0 0.0
        %767 = vmatpush1.msra.mxu0 0.0
        %768 = vmatprep.subr.mxu0 0.0
        %769 = vmatpush1.msra.mxu0 0.0
        %770 = vmatprep.subr.mxu0 0.0
        %771 = vmatpush1.msra.mxu0 0.0
        %772 = vmatprep.subr.mxu0 0.0
        %773 = vmatpush1.msra.mxu0 0.0
        %774 = vmatprep.subr.mxu0 0.0
        %775 = vmatpush1.msra.mxu0 0.0
        %776 = vmatprep.subr.mxu0 0.0
        %777 = vmatpush1.msra.mxu0 0.0
        %778 = vmatprep.subr.mxu0 0.0
        %779 = vmatpush1.msra.mxu0 0.0
        %780 = vmatprep.subr.mxu0 0.0
        %781 = vmatpush1.msra.mxu0 0.0
        %782 = vmatprep.subr.mxu0 0.0
        %783 = vmatpush1.msra.mxu0 0.0
        %784 = vmatprep.subr.mxu0 0.0
        %785 = vmatpush1.msra.mxu0 0.0
        %786 = vmatprep.subr.mxu0 0.0
        %787 = vmatpush1.msra.mxu0 0.0
        %788 = vmatprep.subr.mxu0 0.0
        %789 = vmatpush1.msra.mxu0 0.0
        %790 = vmatprep.subr.mxu0 0.0
        %791 = vmatpush1.msra.mxu0 0.0
        %792 = vmatprep.subr.mxu0 0.0
        %793 = vmatpush1.msra.mxu0 0.0
        %794 = vmatprep.subr.mxu0 0.0
        %795 = vmatpush1.msra.mxu0 0.0
        %796 = vmatprep.subr.mxu0 0.0
        %797 = vmatpush1.msra.mxu0 0.0
        %798 = vmatprep.subr.mxu0 0.0
        %799 = vmatpush1.msra.mxu0 0.0
        %800 = vmatprep.subr.mxu0 0.0
        %801 = vmatpush1.msra.mxu0 0.0
        %802 = vmatprep.subr.mxu0 0.0
        %803 = vmatpush1.msra.mxu0 0.0
        %804 = vmatprep.subr.mxu0 0.0
        %805 = vmatpush1.msra.mxu0 0.0
        %806 = vmatprep.subr.mxu0 0.0
        %807 = vmatpush1.msra.mxu0 0.0
        %808 = vmatprep.mubr.f32.mxu0 0.0
        %809 = vmatmul.mubr.f32.gmra.mrb[0].mxu0 %v697
        %v810 = vpop.f32.mrb[0].mxu0
        %v811 = vadd.f32 0.0, %v810
        %v812 = vpop.f32.mrb[0].mxu0
        %v813 = vadd.f32 0.0, %v812
        %814 = vmatprep.mubr.f32.mxu0 0.0
        %815 = vmatmul.mubr.f32.gmra.mrb[0].mxu0 %v700
        %v816 = vpop.f32.mrb[0].mxu0
        %v817 = vadd.f32 0.0, %v816
        %v818 = vpop.f32.mrb[0].mxu0
        %v819 = vadd.f32 0.0, %v818
        %820 = vmatprep.mubr.f32.mxu0 0.0
        %821 = vmatmul.mubr.f32.gmra.mrb[0].mxu0 %v703
        %v822 = vpop.f32.mrb[0].mxu0
        %v823 = vadd.f32 0.0, %v822
        %v824 = vpop.f32.mrb[0].mxu0
        %v825 = vadd.f32 0.0, %v824
        %826 = vmatprep.mubr.f32.mxu0 0.0
        %827 = vmatmul.mubr.f32.gmra.mrb[0].mxu0 %v706
        %v828 = vpop.f32.mrb[0].mxu0
        %v829 = vadd.f32 0.0, %v828
        %v830 = vpop.f32.mrb[0].mxu0
        %v831 = vadd.f32 0.0, %v830
        %832 = vmatprep.mubr.f32.mxu0 0.0
        %833 = vmatmul.mubr.f32.gmra.mrb[0].mxu0 %v709
        %v834 = vpop.f32.mrb[0].mxu0
        %v835 = vadd.f32 0.0, %v834
        %v836 = vpop.f32.mrb[0].mxu0
        %v837 = vadd.f32 0.0, %v836
        %838 = vmatprep.mubr.f32.mxu0 0.0
        %839 = vmatmul.mubr.f32.gmra.mrb[0].mxu0 %v712
        %v840 = vpop.f32.mrb[0].mxu0
        %v841 = vadd.f32 0.0, %v840
        %v842 = vpop.f32.mrb[0].mxu0
        %v843 = vadd.f32 0.0, %v842
        %844 = vmatprep.mubr.f32.mxu0 0.0
        %845 = vmatmul.mubr.f32.gmra.mrb[0].mxu0 %v715
        %v846 = vpop.f32.mrb[0].mxu0
        %v847 = vadd.f32 0.0, %v846
        %v848 = vpop.f32.mrb[0].mxu0
        %v849 = vadd.f32 0.0, %v848
        %850 = vmatprep.mubr.f32.mxu0 0.0
        %851 = vmatmul.mubr.f32.gmra.mrb[0].mxu0 %v718
        %v852 = vpop.f32.mrb[0].mxu0
        %v853 = vadd.f32 0.0, %v852
        %v854 = vpop.f32.mrb[0].mxu0
        %v855 = vadd.f32 0.0, %v854
        %856 = vmatprep.mubr.f32.mxu0 0.0
        %857 = vmatmul.mubr.f32.gmra.mrb[0].mxu0 %v721
        %v858 = vpop.f32.mrb[0].mxu0
        %v859 = vadd.f32 0.0, %v858
        %v860 = vpop.f32.mrb[0].mxu0
        %v861 = vadd.f32 0.0, %v860
        %862 = vmatprep.mubr.f32.mxu0 0.0
        %863 = vmatmul.mubr.f32.gmra.mrb[0].mxu0 %v724
        %v864 = vpop.f32.mrb[0].mxu0
        %v865 = vadd.f32 0.0, %v864
        %v866 = vpop.f32.mrb[0].mxu0
        %v867 = vadd.f32 0.0, %v866
        %868 = vmatprep.mubr.f32.mxu0 0.0
        %869 = vmatmul.mubr.f32.gmra.mrb[0].mxu0 %v727
        %v870 = vpop.f32.mrb[0].mxu0
        %v871 = vadd.f32 0.0, %v870
        %v872 = vpop.f32.mrb[0].mxu0
        %v873 = vadd.f32 0.0, %v872
        %874 = vmatprep.mubr.f32.mxu0 0.0
        %875 = vmatmul.mubr.f32.gmra.mrb[0].mxu0 %v730
        %v876 = vpop.f32.mrb[0].mxu0
        %v877 = vadd.f32 0.0, %v876
        %v878 = vpop.f32.mrb[0].mxu0
        %v879 = vadd.f32 0.0, %v878
        %880 = vmatprep.mubr.f32.mxu0 0.0
        %881 = vmatmul.mubr.f32.gmra.mrb[0].mxu0 %v733
        %v882 = vpop.f32.mrb[0].mxu0
        %v883 = vadd.f32 0.0, %v882
        %v884 = vpop.f32.mrb[0].mxu0
        %v885 = vadd.f32 0.0, %v884
        %886 = vmatprep.mubr.f32.mxu0 0.0
        %887 = vmatmul.mubr.f32.gmra.mrb[0].mxu0 %v736
        %v888 = vpop.f32.mrb[0].mxu0
        %v889 = vadd.f32 0.0, %v888
        %v890 = vpop.f32.mrb[0].mxu0
        %v891 = vadd.f32 0.0, %v890
        %892 = vmatprep.mubr.f32.mxu0 0.0
        %893 = vmatmul.mubr.f32.gmra.mrb[0].mxu0 %v739
        %v894 = vpop.f32.mrb[0].mxu0
        %v895 = vadd.f32 0.0, %v894
        %v896 = vpop.f32.mrb[0].mxu0
        %v897 = vadd.f32 0.0, %v896
        %898 = vmatprep.mubr.f32.mxu0 0.0
        %899 = vmatmul.mubr.f32.gmra.mrb[0].mxu0 %v742
        %v900 = vpop.f32.mrb[0].mxu0
        %v901 = vadd.f32 0.0, %v900
        %v902 = vpop.f32.mrb[0].mxu0
        %v903 = vadd.f32 0.0, %v902
        %904 = vdwg.mxu0
        %v905 = vmax.f32 %v811, 0.0
        %v906 = vmax.f32 %v813, 0.0
        %v907 = vmax.f32 %v817, 0.0
        %v908 = vmax.f32 %v819, 0.0
        %v909 = vmax.f32 %v823, 0.0
        %v910 = vmax.f32 %v825, 0.0
        %v911 = vmax.f32 %v829, 0.0
        %v912 = vmax.f32 %v831, 0.0
        %v913 = vmax.f32 %v835, 0.0
        %v914 = vmax.f32 %v837, 0.0
        %v915 = vmax.f32 %v841, 0.0
        %v916 = vmax.f32 %v843, 0.0
        %v917 = vmax.f32 %v847, 0.0
        %v918 = vmax.f32 %v849, 0.0
        %v919 = vmax.f32 %v853, 0.0
        %v920 = vmax.f32 %v855, 0.0
        %v921 = vmax.f32 %v859, 0.0
        %v922 = vmax.f32 %v861, 0.0
        %v923 = vmax.f32 %v865, 0.0
        %v924 = vmax.f32 %v867, 0.0
        %v925 = vmax.f32 %v871, 0.0
        %v926 = vmax.f32 %v873, 0.0
        %v927 = vmax.f32 %v877, 0.0
        %v928 = vmax.f32 %v879, 0.0
        %v929 = vmax.f32 %v883, 0.0
        %v930 = vmax.f32 %v885, 0.0
        %v931 = vmax.f32 %v889, 0.0
        %v932 = vmax.f32 %v891, 0.0
        %v933 = vmax.f32 %v895, 0.0
        %v934 = vmax.f32 %v897, 0.0
        %v935 = vmax.f32 %v901, 0.0
        %v936 = vmax.f32 %v903, 0.0
        %v937 = vadd.f32 %v905, %v906
        %v938 = vadd.f32 %v907, %v908
        %v939 = vadd.f32 %v909, %v910
        %v940 = vadd.f32 %v911, %v912
        %v941 = vadd.f32 %v913, %v914
        %v942 = vadd.f32 %v915, %v916
        %v943 = vadd.f32 %v917, %v918
        %v944 = vadd.f32 %v919, %v920
        %v945 = vadd.f32 %v921, %v922
        %v946 = vadd.f32 %v923, %v924
        %v947 = vadd.f32 %v925, %v926
        %v948 = vadd.f32 %v927, %v928
        %v949 = vadd.f32 %v929, %v930
        %v950 = vadd.f32 %v931, %v932
        %v951 = vadd.f32 %v933, %v934
        %v952 = vadd.f32 %v935, %v936
        %v953 = vld [vmem:[#allocation2 + $0x80] sm:$0xff]
        %v954 = vld [vmem:[#allocation2 + $0x88] sm:$0xff]
        %v955 = vld [vmem:[#allocation2 + $0x90] sm:$0xff]
        %v956 = vld [vmem:[#allocation2 + $0x98] sm:$0xff]
        %v957 = vld [vmem:[#allocation2 + $0xa0] sm:$0xff]
        %v958 = vld [vmem:[#allocation2 + $0xa8] sm:$0xff]
        %v959 = vld [vmem:[#allocation2 + $0xb0] sm:$0xff]
        %v960 = vld [vmem:[#allocation2 + $0xb8] sm:$0xff]
        %v961 = vld [vmem:[#allocation2 + $0xc0] sm:$0xff]
        %v962 = vld [vmem:[#allocation2 + $0xc8] sm:$0xff]
        %v963 = vld [vmem:[#allocation2 + $0xd0] sm:$0xff]
        %v964 = vld [vmem:[#allocation2 + $0xd8] sm:$0xff]
        %v965 = vld [vmem:[#allocation2 + $0xe0] sm:$0xff]
        %v966 = vld [vmem:[#allocation2 + $0xe8] sm:$0xff]
        %v967 = vld [vmem:[#allocation2 + $0xf0] sm:$0xff]
        %v968 = vld [vmem:[#allocation2 + $0xf8] sm:$0xff]
        %v969 = vadd.f32 %v953, %v937
        %v970 = vadd.f32 %v954, %v938
        %v971 = vadd.f32 %v955, %v939
        %v972 = vadd.f32 %v956, %v940
        %v973 = vadd.f32 %v957, %v941
        %v974 = vadd.f32 %v958, %v942
        %v975 = vadd.f32 %v959, %v943
        %v976 = vadd.f32 %v960, %v944
        %v977 = vadd.f32 %v961, %v945
        %v978 = vadd.f32 %v962, %v946
        %v979 = vadd.f32 %v963, %v947
        %v980 = vadd.f32 %v964, %v948
        %v981 = vadd.f32 %v965, %v949
        %v982 = vadd.f32 %v966, %v950
        %v983 = vadd.f32 %v967, %v951
        %v984 = vadd.f32 %v968, %v952
        %985 = vst [vmem:[#allocation2 + $0x80] sm:$0xff] %v969
        %986 = vst [vmem:[#allocation2 + $0x88] sm:$0xff] %v970
        %987 = vst [vmem:[#allocation2 + $0x90] sm:$0xff] %v971
        %988 = vst [vmem:[#allocation2 + $0x98] sm:$0xff] %v972
        %989 = vst [vmem:[#allocation2 + $0xa0] sm:$0xff] %v973
        %990 = vst [vmem:[#allocation2 + $0xa8] sm:$0xff] %v974
        %991 = vst [vmem:[#allocation2 + $0xb0] sm:$0xff] %v975
        %992 = vst [vmem:[#allocation2 + $0xb8] sm:$0xff] %v976
        %993 = vst [vmem:[#allocation2 + $0xc0] sm:$0xff] %v977
        %994 = vst [vmem:[#allocation2 + $0xc8] sm:$0xff] %v978
        %995 = vst [vmem:[#allocation2 + $0xd0] sm:$0xff] %v979
        %996 = vst [vmem:[#allocation2 + $0xd8] sm:$0xff] %v980
        %997 = vst [vmem:[#allocation2 + $0xe0] sm:$0xff] %v981
        %998 = vst [vmem:[#allocation2 + $0xe8] sm:$0xff] %v982
        %999 = vst [vmem:[#allocation2 + $0xf0] sm:$0xff] %v983
        %1000 = vst [vmem:[#allocation2 + $0xf8] sm:$0xff] %v984
        %v1001 = vld [vmem:[%s2 + $0x100] sm:$0xff]
        %v1002 = vld [vmem:[%s2 + $0x108] sm:$0xff]
        %v1003 = vld [vmem:[%s2 + $0x110] sm:$0xff]
        %v1004 = vld [vmem:[%s2 + $0x118] sm:$0xff]
        %v1005 = vld [vmem:[%s2 + $0x120] sm:$0xff]
        %v1006 = vld [vmem:[%s2 + $0x128] sm:$0xff]
        %v1007 = vld [vmem:[%s2 + $0x130] sm:$0xff]
        %v1008 = vld [vmem:[%s2 + $0x138] sm:$0xff]
        %v1009 = vld [vmem:[%s2 + $0x140] sm:$0xff]
        %v1010 = vld [vmem:[%s2 + $0x148] sm:$0xff]
        %v1011 = vld [vmem:[%s2 + $0x150] sm:$0xff]
        %v1012 = vld [vmem:[%s2 + $0x158] sm:$0xff]
        %v1013 = vld [vmem:[%s2 + $0x160] sm:$0xff]
        %v1014 = vld [vmem:[%s2 + $0x168] sm:$0xff]
        %v1015 = vld [vmem:[%s2 + $0x170] sm:$0xff]
        %v1016 = vld [vmem:[%s2 + $0x178] sm:$0xff]
        %v1018 = vsel %vm367, %v1001, 0
        %v1021 = vsel %vm367, %v1002, 0
        %v1024 = vsel %vm367, %v1003, 0
        %v1027 = vsel %vm367, %v1004, 0
        %v1030 = vsel %vm367, %v1005, 0
        %v1033 = vsel %vm367, %v1006, 0
        %v1036 = vsel %vm367, %v1007, 0
        %v1039 = vsel %vm367, %v1008, 0
        %v1042 = vsel %vm367, %v1009, 0
        %v1045 = vsel %vm367, %v1010, 0
        %v1048 = vsel %vm367, %v1011, 0
        %v1051 = vsel %vm367, %v1012, 0
        %v1054 = vsel %vm367, %v1013, 0
        %v1057 = vsel %vm367, %v1014, 0
        %v1060 = vsel %vm367, %v1015, 0
        %v1063 = vsel %vm367, %v1016, 0
        %1065 = vmatprep.subr.mxu0 %v421
        %1066 = vmatpush1.msra.mxu0 %v418
        %1067 = vmatprep.subr.mxu0 0.0
        %1068 = vmatpush1.msra.mxu0 0.0
        %1069 = vmatprep.subr.mxu0 0.0
        %1070 = vmatpush1.msra.mxu0 0.0
        %1071 = vmatprep.subr.mxu0 0.0
        %1072 = vmatpush1.msra.mxu0 0.0
        %1073 = vmatprep.subr.mxu0 0.0
        %1074 = vmatpush1.msra.mxu0 0.0
        %1075 = vmatprep.subr.mxu0 0.0
        %1076 = vmatpush1.msra.mxu0 0.0
        %1077 = vmatprep.subr.mxu0 0.0
        %1078 = vmatpush1.msra.mxu0 0.0
        %1079 = vmatprep.subr.mxu0 0.0
        %1080 = vmatpush1.msra.mxu0 0.0
        %1081 = vmatprep.subr.mxu0 0.0
        %1082 = vmatpush1.msra.mxu0 0.0
        %1083 = vmatprep.subr.mxu0 0.0
        %1084 = vmatpush1.msra.mxu0 0.0
        %1085 = vmatprep.subr.mxu0 0.0
        %1086 = vmatpush1.msra.mxu0 0.0
        %1087 = vmatprep.subr.mxu0 0.0
        %1088 = vmatpush1.msra.mxu0 0.0
        %1089 = vmatprep.subr.mxu0 0.0
        %1090 = vmatpush1.msra.mxu0 0.0
        %1091 = vmatprep.subr.mxu0 0.0
        %1092 = vmatpush1.msra.mxu0 0.0
        %1093 = vmatprep.subr.mxu0 0.0
        %1094 = vmatpush1.msra.mxu0 0.0
        %1095 = vmatprep.subr.mxu0 0.0
        %1096 = vmatpush1.msra.mxu0 0.0
        %1097 = vmatprep.subr.mxu0 0.0
        %1098 = vmatpush1.msra.mxu0 0.0
        %1099 = vmatprep.subr.mxu0 0.0
        %1100 = vmatpush1.msra.mxu0 0.0
        %1101 = vmatprep.subr.mxu0 0.0
        %1102 = vmatpush1.msra.mxu0 0.0
        %1103 = vmatprep.subr.mxu0 0.0
        %1104 = vmatpush1.msra.mxu0 0.0
        %1105 = vmatprep.subr.mxu0 0.0
        %1106 = vmatpush1.msra.mxu0 0.0
        %1107 = vmatprep.subr.mxu0 0.0
        %1108 = vmatpush1.msra.mxu0 0.0
        %1109 = vmatprep.subr.mxu0 0.0
        %1110 = vmatpush1.msra.mxu0 0.0
        %1111 = vmatprep.subr.mxu0 0.0
        %1112 = vmatpush1.msra.mxu0 0.0
        %1113 = vmatprep.subr.mxu0 0.0
        %1114 = vmatpush1.msra.mxu0 0.0
        %1115 = vmatprep.subr.mxu0 0.0
        %1116 = vmatpush1.msra.mxu0 0.0
        %1117 = vmatprep.subr.mxu0 0.0
        %1118 = vmatpush1.msra.mxu0 0.0
        %1119 = vmatprep.subr.mxu0 0.0
        %1120 = vmatpush1.msra.mxu0 0.0
        %1121 = vmatprep.subr.mxu0 0.0
        %1122 = vmatpush1.msra.mxu0 0.0
        %1123 = vmatprep.subr.mxu0 0.0
        %1124 = vmatpush1.msra.mxu0 0.0
        %1125 = vmatprep.subr.mxu0 0.0
        %1126 = vmatpush1.msra.mxu0 0.0
        %1127 = vmatprep.subr.mxu0 0.0
        %1128 = vmatpush1.msra.mxu0 0.0
        %1129 = vmatprep.mubr.f32.mxu0 0.0
        %1130 = vmatmul.mubr.f32.gmra.mrb[0].mxu0 %v1018
        %v1131 = vpop.f32.mrb[0].mxu0
        %v1132 = vadd.f32 0.0, %v1131
        %v1133 = vpop.f32.mrb[0].mxu0
        %v1134 = vadd.f32 0.0, %v1133
        %1135 = vmatprep.mubr.f32.mxu0 0.0
        %1136 = vmatmul.mubr.f32.gmra.mrb[0].mxu0 %v1021
        %v1137 = vpop.f32.mrb[0].mxu0
        %v1138 = vadd.f32 0.0, %v1137
        %v1139 = vpop.f32.mrb[0].mxu0
        %v1140 = vadd.f32 0.0, %v1139
        %1141 = vmatprep.mubr.f32.mxu0 0.0
        %1142 = vmatmul.mubr.f32.gmra.mrb[0].mxu0 %v1024
        %v1143 = vpop.f32.mrb[0].mxu0
        %v1144 = vadd.f32 0.0, %v1143
        %v1145 = vpop.f32.mrb[0].mxu0
        %v1146 = vadd.f32 0.0, %v1145
        %1147 = vmatprep.mubr.f32.mxu0 0.0
        %1148 = vmatmul.mubr.f32.gmra.mrb[0].mxu0 %v1027
        %v1149 = vpop.f32.mrb[0].mxu0
        %v1150 = vadd.f32 0.0, %v1149
        %v1151 = vpop.f32.mrb[0].mxu0
        %v1152 = vadd.f32 0.0, %v1151
        %1153 = vmatprep.mubr.f32.mxu0 0.0
        %1154 = vmatmul.mubr.f32.gmra.mrb[0].mxu0 %v1030
        %v1155 = vpop.f32.mrb[0].mxu0
        %v1156 = vadd.f32 0.0, %v1155
        %v1157 = vpop.f32.mrb[0].mxu0
        %v1158 = vadd.f32 0.0, %v1157
        %1159 = vmatprep.mubr.f32.mxu0 0.0
        %1160 = vmatmul.mubr.f32.gmra.mrb[0].mxu0 %v1033
        %v1161 = vpop.f32.mrb[0].mxu0
        %v1162 = vadd.f32 0.0, %v1161
        %v1163 = vpop.f32.mrb[0].mxu0
        %v1164 = vadd.f32 0.0, %v1163
        %1165 = vmatprep.mubr.f32.mxu0 0.0
        %1166 = vmatmul.mubr.f32.gmra.mrb[0].mxu0 %v1036
        %v1167 = vpop.f32.mrb[0].mxu0
        %v1168 = vadd.f32 0.0, %v1167
        %v1169 = vpop.f32.mrb[0].mxu0
        %v1170 = vadd.f32 0.0, %v1169
        %1171 = vmatprep.mubr.f32.mxu0 0.0
        %1172 = vmatmul.mubr.f32.gmra.mrb[0].mxu0 %v1039
        %v1173 = vpop.f32.mrb[0].mxu0
        %v1174 = vadd.f32 0.0, %v1173
        %v1175 = vpop.f32.mrb[0].mxu0
        %v1176 = vadd.f32 0.0, %v1175
        %1177 = vmatprep.mubr.f32.mxu0 0.0
        %1178 = vmatmul.mubr.f32.gmra.mrb[0].mxu0 %v1042
        %v1179 = vpop.f32.mrb[0].mxu0
        %v1180 = vadd.f32 0.0, %v1179
        %v1181 = vpop.f32.mrb[0].mxu0
        %v1182 = vadd.f32 0.0, %v1181
        %1183 = vmatprep.mubr.f32.mxu0 0.0
        %1184 = vmatmul.mubr.f32.gmra.mrb[0].mxu0 %v1045
        %v1185 = vpop.f32.mrb[0].mxu0
        %v1186 = vadd.f32 0.0, %v1185
        %v1187 = vpop.f32.mrb[0].mxu0
        %v1188 = vadd.f32 0.0, %v1187
        %1189 = vmatprep.mubr.f32.mxu0 0.0
        %1190 = vmatmul.mubr.f32.gmra.mrb[0].mxu0 %v1048
        %v1191 = vpop.f32.mrb[0].mxu0
        %v1192 = vadd.f32 0.0, %v1191
        %v1193 = vpop.f32.mrb[0].mxu0
        %v1194 = vadd.f32 0.0, %v1193
        %1195 = vmatprep.mubr.f32.mxu0 0.0
        %1196 = vmatmul.mubr.f32.gmra.mrb[0].mxu0 %v1051
        %v1197 = vpop.f32.mrb[0].mxu0
        %v1198 = vadd.f32 0.0, %v1197
        %v1199 = vpop.f32.mrb[0].mxu0
        %v1200 = vadd.f32 0.0, %v1199
        %1201 = vmatprep.mubr.f32.mxu0 0.0
        %1202 = vmatmul.mubr.f32.gmra.mrb[0].mxu0 %v1054
        %v1203 = vpop.f32.mrb[0].mxu0
        %v1204 = vadd.f32 0.0, %v1203
        %v1205 = vpop.f32.mrb[0].mxu0
        %v1206 = vadd.f32 0.0, %v1205
        %1207 = vmatprep.mubr.f32.mxu0 0.0
        %1208 = vmatmul.mubr.f32.gmra.mrb[0].mxu0 %v1057
        %v1209 = vpop.f32.mrb[0].mxu0
        %v1210 = vadd.f32 0.0, %v1209
        %v1211 = vpop.f32.mrb[0].mxu0
        %v1212 = vadd.f32 0.0, %v1211
        %1213 = vmatprep.mubr.f32.mxu0 0.0
        %1214 = vmatmul.mubr.f32.gmra.mrb[0].mxu0 %v1060
        %v1215 = vpop.f32.mrb[0].mxu0
        %v1216 = vadd.f32 0.0, %v1215
        %v1217 = vpop.f32.mrb[0].mxu0
        %v1218 = vadd.f32 0.0, %v1217
        %1219 = vmatprep.mubr.f32.mxu0 0.0
        %1220 = vmatmul.mubr.f32.gmra.mrb[0].mxu0 %v1063
        %v1221 = vpop.f32.mrb[0].mxu0
        %v1222 = vadd.f32 0.0, %v1221
        %v1223 = vpop.f32.mrb[0].mxu0
        %v1224 = vadd.f32 0.0, %v1223
        %1225 = vdwg.mxu0
        %v1226 = vmax.f32 %v1132, 0.0
        %v1227 = vmax.f32 %v1134, 0.0
        %v1228 = vmax.f32 %v1138, 0.0
        %v1229 = vmax.f32 %v1140, 0.0
        %v1230 = vmax.f32 %v1144, 0.0
        %v1231 = vmax.f32 %v1146, 0.0
        %v1232 = vmax.f32 %v1150, 0.0
        %v1233 = vmax.f32 %v1152, 0.0
        %v1234 = vmax.f32 %v1156, 0.0
        %v1235 = vmax.f32 %v1158, 0.0
        %v1236 = vmax.f32 %v1162, 0.0
        %v1237 = vmax.f32 %v1164, 0.0
        %v1238 = vmax.f32 %v1168, 0.0
        %v1239 = vmax.f32 %v1170, 0.0
        %v1240 = vmax.f32 %v1174, 0.0
        %v1241 = vmax.f32 %v1176, 0.0
        %v1242 = vmax.f32 %v1180, 0.0
        %v1243 = vmax.f32 %v1182, 0.0
        %v1244 = vmax.f32 %v1186, 0.0
        %v1245 = vmax.f32 %v1188, 0.0
        %v1246 = vmax.f32 %v1192, 0.0
        %v1247 = vmax.f32 %v1194, 0.0
        %v1248 = vmax.f32 %v1198, 0.0
        %v1249 = vmax.f32 %v1200, 0.0
        %v1250 = vmax.f32 %v1204, 0.0
        %v1251 = vmax.f32 %v1206, 0.0
        %v1252 = vmax.f32 %v1210, 0.0
        %v1253 = vmax.f32 %v1212, 0.0
        %v1254 = vmax.f32 %v1216, 0.0
        %v1255 = vmax.f32 %v1218, 0.0
        %v1256 = vmax.f32 %v1222, 0.0
        %v1257 = vmax.f32 %v1224, 0.0
        %v1258 = vadd.f32 %v1226, %v1227
        %v1259 = vadd.f32 %v1228, %v1229
        %v1260 = vadd.f32 %v1230, %v1231
        %v1261 = vadd.f32 %v1232, %v1233
        %v1262 = vadd.f32 %v1234, %v1235
        %v1263 = vadd.f32 %v1236, %v1237
        %v1264 = vadd.f32 %v1238, %v1239
        %v1265 = vadd.f32 %v1240, %v1241
        %v1266 = vadd.f32 %v1242, %v1243
        %v1267 = vadd.f32 %v1244, %v1245
        %v1268 = vadd.f32 %v1246, %v1247
        %v1269 = vadd.f32 %v1248, %v1249
        %v1270 = vadd.f32 %v1250, %v1251
        %v1271 = vadd.f32 %v1252, %v1253
        %v1272 = vadd.f32 %v1254, %v1255
        %v1273 = vadd.f32 %v1256, %v1257
        %v1274 = vld [vmem:[#allocation2 + $0x100] sm:$0xff]
        %v1275 = vld [vmem:[#allocation2 + $0x108] sm:$0xff]
        %v1276 = vld [vmem:[#allocation2 + $0x110] sm:$0xff]
        %v1277 = vld [vmem:[#allocation2 + $0x118] sm:$0xff]
        %v1278 = vld [vmem:[#allocation2 + $0x120] sm:$0xff]
        %v1279 = vld [vmem:[#allocation2 + $0x128] sm:$0xff]
        %v1280 = vld [vmem:[#allocation2 + $0x130] sm:$0xff]
        %v1281 = vld [vmem:[#allocation2 + $0x138] sm:$0xff]
        %v1282 = vld [vmem:[#allocation2 + $0x140] sm:$0xff]
        %v1283 = vld [vmem:[#allocation2 + $0x148] sm:$0xff]
        %v1284 = vld [vmem:[#allocation2 + $0x150] sm:$0xff]
        %v1285 = vld [vmem:[#allocation2 + $0x158] sm:$0xff]
        %v1286 = vld [vmem:[#allocation2 + $0x160] sm:$0xff]
        %v1287 = vld [vmem:[#allocation2 + $0x168] sm:$0xff]
        %v1288 = vld [vmem:[#allocation2 + $0x170] sm:$0xff]
        %v1289 = vld [vmem:[#allocation2 + $0x178] sm:$0xff]
        %v1290 = vadd.f32 %v1274, %v1258
        %v1291 = vadd.f32 %v1275, %v1259
        %v1292 = vadd.f32 %v1276, %v1260
        %v1293 = vadd.f32 %v1277, %v1261
        %v1294 = vadd.f32 %v1278, %v1262
        %v1295 = vadd.f32 %v1279, %v1263
        %v1296 = vadd.f32 %v1280, %v1264
        %v1297 = vadd.f32 %v1281, %v1265
        %v1298 = vadd.f32 %v1282, %v1266
        %v1299 = vadd.f32 %v1283, %v1267
        %v1300 = vadd.f32 %v1284, %v1268
        %v1301 = vadd.f32 %v1285, %v1269
        %v1302 = vadd.f32 %v1286, %v1270
        %v1303 = vadd.f32 %v1287, %v1271
        %v1304 = vadd.f32 %v1288, %v1272
        %v1305 = vadd.f32 %v1289, %v1273
        %1306 = vst [vmem:[#allocation2 + $0x100] sm:$0xff] %v1290
        %1307 = vst [vmem:[#allocation2 + $0x108] sm:$0xff] %v1291
        %1308 = vst [vmem:[#allocation2 + $0x110] sm:$0xff] %v1292
        %1309 = vst [vmem:[#allocation2 + $0x118] sm:$0xff] %v1293
        %1310 = vst [vmem:[#allocation2 + $0x120] sm:$0xff] %v1294
        %1311 = vst [vmem:[#allocation2 + $0x128] sm:$0xff] %v1295
        %1312 = vst [vmem:[#allocation2 + $0x130] sm:$0xff] %v1296
        %1313 = vst [vmem:[#allocation2 + $0x138] sm:$0xff] %v1297
        %1314 = vst [vmem:[#allocation2 + $0x140] sm:$0xff] %v1298
        %1315 = vst [vmem:[#allocation2 + $0x148] sm:$0xff] %v1299
        %1316 = vst [vmem:[#allocation2 + $0x150] sm:$0xff] %v1300
        %1317 = vst [vmem:[#allocation2 + $0x158] sm:$0xff] %v1301
        %1318 = vst [vmem:[#allocation2 + $0x160] sm:$0xff] %v1302
        %1319 = vst [vmem:[#allocation2 + $0x168] sm:$0xff] %v1303
        %1320 = vst [vmem:[#allocation2 + $0x170] sm:$0xff] %v1304
        %1321 = vst [vmem:[#allocation2 + $0x178] sm:$0xff] %v1305
        %v1322 = vld [vmem:[%s2 + $0x180] sm:$0xff]
        %v1323 = vld [vmem:[%s2 + $0x188] sm:$0xff]
        %v1324 = vld [vmem:[%s2 + $0x190] sm:$0xff]
        %v1325 = vld [vmem:[%s2 + $0x198] sm:$0xff]
        %v1326 = vld [vmem:[%s2 + $0x1a0] sm:$0xff]
        %v1327 = vld [vmem:[%s2 + $0x1a8] sm:$0xff]
        %v1328 = vld [vmem:[%s2 + $0x1b0] sm:$0xff]
        %v1329 = vld [vmem:[%s2 + $0x1b8] sm:$0xff]
        %v1330 = vld [vmem:[%s2 + $0x1c0] sm:$0xff]
        %v1331 = vld [vmem:[%s2 + $0x1c8] sm:$0xff]
        %v1332 = vld [vmem:[%s2 + $0x1d0] sm:$0xff]
        %v1333 = vld [vmem:[%s2 + $0x1d8] sm:$0xff]
        %v1334 = vld [vmem:[%s2 + $0x1e0] sm:$0xff]
        %v1335 = vld [vmem:[%s2 + $0x1e8] sm:$0xff]
        %v1336 = vld [vmem:[%s2 + $0x1f0] sm:$0xff]
        %v1337 = vld [vmem:[%s2 + $0x1f8] sm:$0xff]
        %v1339 = vsel %vm367, %v1322, 0
        %v1342 = vsel %vm367, %v1323, 0
        %v1345 = vsel %vm367, %v1324, 0
        %v1348 = vsel %vm367, %v1325, 0
        %v1351 = vsel %vm367, %v1326, 0
        %v1354 = vsel %vm367, %v1327, 0
        %v1357 = vsel %vm367, %v1328, 0
        %v1360 = vsel %vm367, %v1329, 0
        %v1363 = vsel %vm367, %v1330, 0
        %v1366 = vsel %vm367, %v1331, 0
        %v1369 = vsel %vm367, %v1332, 0
        %v1372 = vsel %vm367, %v1333, 0
        %v1375 = vsel %vm367, %v1334, 0
        %v1378 = vsel %vm367, %v1335, 0
        %v1381 = vsel %vm367, %v1336, 0
        %v1384 = vsel %vm367, %v1337, 0
        %1386 = vmatprep.subr.mxu0 %v421
        %1387 = vmatpush1.msra.mxu0 %v418
        %1388 = vmatprep.subr.mxu0 0.0
        %1389 = vmatpush1.msra.mxu0 0.0
        %1390 = vmatprep.subr.mxu0 0.0
        %1391 = vmatpush1.msra.mxu0 0.0
        %1392 = vmatprep.subr.mxu0 0.0
        %1393 = vmatpush1.msra.mxu0 0.0
        %1394 = vmatprep.subr.mxu0 0.0
        %1395 = vmatpush1.msra.mxu0 0.0
        %1396 = vmatprep.subr.mxu0 0.0
        %1397 = vmatpush1.msra.mxu0 0.0
        %1398 = vmatprep.subr.mxu0 0.0
        %1399 = vmatpush1.msra.mxu0 0.0
        %1400 = vmatprep.subr.mxu0 0.0
        %1401 = vmatpush1.msra.mxu0 0.0
        %1402 = vmatprep.subr.mxu0 0.0
        %1403 = vmatpush1.msra.mxu0 0.0
        %1404 = vmatprep.subr.mxu0 0.0
        %1405 = vmatpush1.msra.mxu0 0.0
        %1406 = vmatprep.subr.mxu0 0.0
        %1407 = vmatpush1.msra.mxu0 0.0
        %1408 = vmatprep.subr.mxu0 0.0
        %1409 = vmatpush1.msra.mxu0 0.0
        %1410 = vmatprep.subr.mxu0 0.0
        %1411 = vmatpush1.msra.mxu0 0.0
        %1412 = vmatprep.subr.mxu0 0.0
        %1413 = vmatpush1.msra.mxu0 0.0
        %1414 = vmatprep.subr.mxu0 0.0
        %1415 = vmatpush1.msra.mxu0 0.0
        %1416 = vmatprep.subr.mxu0 0.0
        %1417 = vmatpush1.msra.mxu0 0.0
        %1418 = vmatprep.subr.mxu0 0.0
        %1419 = vmatpush1.msra.mxu0 0.0
        %1420 = vmatprep.subr.mxu0 0.0
        %1421 = vmatpush1.msra.mxu0 0.0
        %1422 = vmatprep.subr.mxu0 0.0
        %1423 = vmatpush1.msra.mxu0 0.0
        %1424 = vmatprep.subr.mxu0 0.0
        %1425 = vmatpush1.msra.mxu0 0.0
        %1426 = vmatprep.subr.mxu0 0.0
        %1427 = vmatpush1.msra.mxu0 0.0
        %1428 = vmatprep.subr.mxu0 0.0
        %1429 = vmatpush1.msra.mxu0 0.0
        %1430 = vmatprep.subr.mxu0 0.0
        %1431 = vmatpush1.msra.mxu0 0.0
        %1432 = vmatprep.subr.mxu0 0.0
        %1433 = vmatpush1.msra.mxu0 0.0
        %1434 = vmatprep.subr.mxu0 0.0
        %1435 = vmatpush1.msra.mxu0 0.0
        %1436 = vmatprep.subr.mxu0 0.0
        %1437 = vmatpush1.msra.mxu0 0.0
        %1438 = vmatprep.subr.mxu0 0.0
        %1439 = vmatpush1.msra.mxu0 0.0
        %1440 = vmatprep.subr.mxu0 0.0
        %1441 = vmatpush1.msra.mxu0 0.0
        %1442 = vmatprep.subr.mxu0 0.0
        %1443 = vmatpush1.msra.mxu0 0.0
        %1444 = vmatprep.subr.mxu0 0.0
        %1445 = vmatpush1.msra.mxu0 0.0
        %1446 = vmatprep.subr.mxu0 0.0
        %1447 = vmatpush1.msra.mxu0 0.0
        %1448 = vmatprep.subr.mxu0 0.0
        %1449 = vmatpush1.msra.mxu0 0.0
        %1450 = vmatprep.mubr.f32.mxu0 0.0
        %1451 = vmatmul.mubr.f32.gmra.mrb[0].mxu0 %v1339
        %v1452 = vpop.f32.mrb[0].mxu0
        %v1453 = vadd.f32 0.0, %v1452
        %v1454 = vpop.f32.mrb[0].mxu0
        %v1455 = vadd.f32 0.0, %v1454
        %1456 = vmatprep.mubr.f32.mxu0 0.0
        %1457 = vmatmul.mubr.f32.gmra.mrb[0].mxu0 %v1342
        %v1458 = vpop.f32.mrb[0].mxu0
        %v1459 = vadd.f32 0.0, %v1458
        %v1460 = vpop.f32.mrb[0].mxu0
        %v1461 = vadd.f32 0.0, %v1460
        %1462 = vmatprep.mubr.f32.mxu0 0.0
        %1463 = vmatmul.mubr.f32.gmra.mrb[0].mxu0 %v1345
        %v1464 = vpop.f32.mrb[0].mxu0
        %v1465 = vadd.f32 0.0, %v1464
        %v1466 = vpop.f32.mrb[0].mxu0
        %v1467 = vadd.f32 0.0, %v1466
        %1468 = vmatprep.mubr.f32.mxu0 0.0
        %1469 = vmatmul.mubr.f32.gmra.mrb[0].mxu0 %v1348
        %v1470 = vpop.f32.mrb[0].mxu0
        %v1471 = vadd.f32 0.0, %v1470
        %v1472 = vpop.f32.mrb[0].mxu0
        %v1473 = vadd.f32 0.0, %v1472
        %1474 = vmatprep.mubr.f32.mxu0 0.0
        %1475 = vmatmul.mubr.f32.gmra.mrb[0].mxu0 %v1351
        %v1476 = vpop.f32.mrb[0].mxu0
        %v1477 = vadd.f32 0.0, %v1476
        %v1478 = vpop.f32.mrb[0].mxu0
        %v1479 = vadd.f32 0.0, %v1478
        %1480 = vmatprep.mubr.f32.mxu0 0.0
        %1481 = vmatmul.mubr.f32.gmra.mrb[0].mxu0 %v1354
        %v1482 = vpop.f32.mrb[0].mxu0
        %v1483 = vadd.f32 0.0, %v1482
        %v1484 = vpop.f32.mrb[0].mxu0
        %v1485 = vadd.f32 0.0, %v1484
        %1486 = vmatprep.mubr.f32.mxu0 0.0
        %1487 = vmatmul.mubr.f32.gmra.mrb[0].mxu0 %v1357
        %v1488 = vpop.f32.mrb[0].mxu0
        %v1489 = vadd.f32 0.0, %v1488
        %v1490 = vpop.f32.mrb[0].mxu0
        %v1491 = vadd.f32 0.0, %v1490
        %1492 = vmatprep.mubr.f32.mxu0 0.0
        %1493 = vmatmul.mubr.f32.gmra.mrb[0].mxu0 %v1360
        %v1494 = vpop.f32.mrb[0].mxu0
        %v1495 = vadd.f32 0.0, %v1494
        %v1496 = vpop.f32.mrb[0].mxu0
        %v1497 = vadd.f32 0.0, %v1496
        %1498 = vmatprep.mubr.f32.mxu0 0.0
        %1499 = vmatmul.mubr.f32.gmra.mrb[0].mxu0 %v1363
        %v1500 = vpop.f32.mrb[0].mxu0
        %v1501 = vadd.f32 0.0, %v1500
        %v1502 = vpop.f32.mrb[0].mxu0
        %v1503 = vadd.f32 0.0, %v1502
        %1504 = vmatprep.mubr.f32.mxu0 0.0
        %1505 = vmatmul.mubr.f32.gmra.mrb[0].mxu0 %v1366
        %v1506 = vpop.f32.mrb[0].mxu0
        %v1507 = vadd.f32 0.0, %v1506
        %v1508 = vpop.f32.mrb[0].mxu0
        %v1509 = vadd.f32 0.0, %v1508
        %1510 = vmatprep.mubr.f32.mxu0 0.0
        %1511 = vmatmul.mubr.f32.gmra.mrb[0].mxu0 %v1369
        %v1512 = vpop.f32.mrb[0].mxu0
        %v1513 = vadd.f32 0.0, %v1512
        %v1514 = vpop.f32.mrb[0].mxu0
        %v1515 = vadd.f32 0.0, %v1514
        %1516 = vmatprep.mubr.f32.mxu0 0.0
        %1517 = vmatmul.mubr.f32.gmra.mrb[0].mxu0 %v1372
        %v1518 = vpop.f32.mrb[0].mxu0
        %v1519 = vadd.f32 0.0, %v1518
        %v1520 = vpop.f32.mrb[0].mxu0
        %v1521 = vadd.f32 0.0, %v1520
        %1522 = vmatprep.mubr.f32.mxu0 0.0
        %1523 = vmatmul.mubr.f32.gmra.mrb[0].mxu0 %v1375
        %v1524 = vpop.f32.mrb[0].mxu0
        %v1525 = vadd.f32 0.0, %v1524
        %v1526 = vpop.f32.mrb[0].mxu0
        %v1527 = vadd.f32 0.0, %v1526
        %1528 = vmatprep.mubr.f32.mxu0 0.0
        %1529 = vmatmul.mubr.f32.gmra.mrb[0].mxu0 %v1378
        %v1530 = vpop.f32.mrb[0].mxu0
        %v1531 = vadd.f32 0.0, %v1530
        %v1532 = vpop.f32.mrb[0].mxu0
        %v1533 = vadd.f32 0.0, %v1532
        %1534 = vmatprep.mubr.f32.mxu0 0.0
        %1535 = vmatmul.mubr.f32.gmra.mrb[0].mxu0 %v1381
        %v1536 = vpop.f32.mrb[0].mxu0
        %v1537 = vadd.f32 0.0, %v1536
        %v1538 = vpop.f32.mrb[0].mxu0
        %v1539 = vadd.f32 0.0, %v1538
        %1540 = vmatprep.mubr.f32.mxu0 0.0
        %1541 = vmatmul.mubr.f32.gmra.mrb[0].mxu0 %v1384
        %v1542 = vpop.f32.mrb[0].mxu0
        %v1543 = vadd.f32 0.0, %v1542
        %v1544 = vpop.f32.mrb[0].mxu0
        %v1545 = vadd.f32 0.0, %v1544
        %1546 = vdwg.mxu0
        %v1547 = vmax.f32 %v1453, 0.0
        %v1548 = vmax.f32 %v1455, 0.0
        %v1549 = vmax.f32 %v1459, 0.0
        %v1550 = vmax.f32 %v1461, 0.0
        %v1551 = vmax.f32 %v1465, 0.0
        %v1552 = vmax.f32 %v1467, 0.0
        %v1553 = vmax.f32 %v1471, 0.0
        %v1554 = vmax.f32 %v1473, 0.0
        %v1555 = vmax.f32 %v1477, 0.0
        %v1556 = vmax.f32 %v1479, 0.0
        %v1557 = vmax.f32 %v1483, 0.0
        %v1558 = vmax.f32 %v1485, 0.0
        %v1559 = vmax.f32 %v1489, 0.0
        %v1560 = vmax.f32 %v1491, 0.0
        %v1561 = vmax.f32 %v1495, 0.0
        %v1562 = vmax.f32 %v1497, 0.0
        %v1563 = vmax.f32 %v1501, 0.0
        %v1564 = vmax.f32 %v1503, 0.0
        %v1565 = vmax.f32 %v1507, 0.0
        %v1566 = vmax.f32 %v1509, 0.0
        %v1567 = vmax.f32 %v1513, 0.0
        %v1568 = vmax.f32 %v1515, 0.0
        %v1569 = vmax.f32 %v1519, 0.0
        %v1570 = vmax.f32 %v1521, 0.0
        %v1571 = vmax.f32 %v1525, 0.0
        %v1572 = vmax.f32 %v1527, 0.0
        %v1573 = vmax.f32 %v1531, 0.0
        %v1574 = vmax.f32 %v1533, 0.0
        %v1575 = vmax.f32 %v1537, 0.0
        %v1576 = vmax.f32 %v1539, 0.0
        %v1577 = vmax.f32 %v1543, 0.0
        %v1578 = vmax.f32 %v1545, 0.0
        %v1579 = vadd.f32 %v1547, %v1548
        %v1580 = vadd.f32 %v1549, %v1550
        %v1581 = vadd.f32 %v1551, %v1552
        %v1582 = vadd.f32 %v1553, %v1554
        %v1583 = vadd.f32 %v1555, %v1556
        %v1584 = vadd.f32 %v1557, %v1558
        %v1585 = vadd.f32 %v1559, %v1560
        %v1586 = vadd.f32 %v1561, %v1562
        %v1587 = vadd.f32 %v1563, %v1564
        %v1588 = vadd.f32 %v1565, %v1566
        %v1589 = vadd.f32 %v1567, %v1568
        %v1590 = vadd.f32 %v1569, %v1570
        %v1591 = vadd.f32 %v1571, %v1572
        %v1592 = vadd.f32 %v1573, %v1574
        %v1593 = vadd.f32 %v1575, %v1576
        %v1594 = vadd.f32 %v1577, %v1578
        %v1595 = vld [vmem:[#allocation2 + $0x180] sm:$0xff]
        %v1596 = vld [vmem:[#allocation2 + $0x188] sm:$0xff]
        %v1597 = vld [vmem:[#allocation2 + $0x190] sm:$0xff]
        %v1598 = vld [vmem:[#allocation2 + $0x198] sm:$0xff]
        %v1599 = vld [vmem:[#allocation2 + $0x1a0] sm:$0xff]
        %v1600 = vld [vmem:[#allocation2 + $0x1a8] sm:$0xff]
        %v1601 = vld [vmem:[#allocation2 + $0x1b0] sm:$0xff]
        %v1602 = vld [vmem:[#allocation2 + $0x1b8] sm:$0xff]
        %v1603 = vld [vmem:[#allocation2 + $0x1c0] sm:$0xff]
        %v1604 = vld [vmem:[#allocation2 + $0x1c8] sm:$0xff]
        %v1605 = vld [vmem:[#allocation2 + $0x1d0] sm:$0xff]
        %v1606 = vld [vmem:[#allocation2 + $0x1d8] sm:$0xff]
        %v1607 = vld [vmem:[#allocation2 + $0x1e0] sm:$0xff]
        %v1608 = vld [vmem:[#allocation2 + $0x1e8] sm:$0xff]
        %v1609 = vld [vmem:[#allocation2 + $0x1f0] sm:$0xff]
        %v1610 = vld [vmem:[#allocation2 + $0x1f8] sm:$0xff]
        %v1611 = vadd.f32 %v1595, %v1579
        %v1612 = vadd.f32 %v1596, %v1580
        %v1613 = vadd.f32 %v1597, %v1581
        %v1614 = vadd.f32 %v1598, %v1582
        %v1615 = vadd.f32 %v1599, %v1583
        %v1616 = vadd.f32 %v1600, %v1584
        %v1617 = vadd.f32 %v1601, %v1585
        %v1618 = vadd.f32 %v1602, %v1586
        %v1619 = vadd.f32 %v1603, %v1587
        %v1620 = vadd.f32 %v1604, %v1588
        %v1621 = vadd.f32 %v1605, %v1589
        %v1622 = vadd.f32 %v1606, %v1590
        %v1623 = vadd.f32 %v1607, %v1591
        %v1624 = vadd.f32 %v1608, %v1592
        %v1625 = vadd.f32 %v1609, %v1593
        %v1626 = vadd.f32 %v1610, %v1594
        %1627 = vst [vmem:[#allocation2 + $0x180] sm:$0xff] %v1611
        %1628 = vst [vmem:[#allocation2 + $0x188] sm:$0xff] %v1612
        %1629 = vst [vmem:[#allocation2 + $0x190] sm:$0xff] %v1613
        %1630 = vst [vmem:[#allocation2 + $0x198] sm:$0xff] %v1614
        %1631 = vst [vmem:[#allocation2 + $0x1a0] sm:$0xff] %v1615
        %1632 = vst [vmem:[#allocation2 + $0x1a8] sm:$0xff] %v1616
        %1633 = vst [vmem:[#allocation2 + $0x1b0] sm:$0xff] %v1617
        %1634 = vst [vmem:[#allocation2 + $0x1b8] sm:$0xff] %v1618
        %1635 = vst [vmem:[#allocation2 + $0x1c0] sm:$0xff] %v1619
        %1636 = vst [vmem:[#allocation2 + $0x1c8] sm:$0xff] %v1620
        %1637 = vst [vmem:[#allocation2 + $0x1d0] sm:$0xff] %v1621
        %1638 = vst [vmem:[#allocation2 + $0x1d8] sm:$0xff] %v1622
        %1639 = vst [vmem:[#allocation2 + $0x1e0] sm:$0xff] %v1623
        %1640 = vst [vmem:[#allocation2 + $0x1e8] sm:$0xff] %v1624
        %1641 = vst [vmem:[#allocation2 + $0x1f0] sm:$0xff] %v1625
        %1642 = vst [vmem:[#allocation2 + $0x1f8] sm:$0xff] %v1626
        // Predicated region
        $region45: #{tpu_custom_call.1} parent=39 // pred_check
          %p1643 = pneg %p272
        $region46: #{tpu_custom_call.1} parent=39 // pred_check_branch
          %1645 = sbr.rel (%p1643) target = $region48
        $region47: #{tpu_custom_call.1} parent=39 // pred_region
          %v1646 = vld [vmem:[#allocation2] sm:$0xff]
          %v1647 = vld [vmem:[#allocation2 + $0x8] sm:$0xff]
          %v1648 = vld [vmem:[#allocation2 + $0x10] sm:$0xff]
          %v1649 = vld [vmem:[#allocation2 + $0x18] sm:$0xff]
          %v1650 = vld [vmem:[#allocation2 + $0x20] sm:$0xff]
          %v1651 = vld [vmem:[#allocation2 + $0x28] sm:$0xff]
          %v1652 = vld [vmem:[#allocation2 + $0x30] sm:$0xff]
          %v1653 = vld [vmem:[#allocation2 + $0x38] sm:$0xff]
          %v1654 = vld [vmem:[#allocation2 + $0x40] sm:$0xff]
          %v1655 = vld [vmem:[#allocation2 + $0x48] sm:$0xff]
          %v1656 = vld [vmem:[#allocation2 + $0x50] sm:$0xff]
          %v1657 = vld [vmem:[#allocation2 + $0x58] sm:$0xff]
          %v1658 = vld [vmem:[#allocation2 + $0x60] sm:$0xff]
          %v1659 = vld [vmem:[#allocation2 + $0x68] sm:$0xff]
          %v1660 = vld [vmem:[#allocation2 + $0x70] sm:$0xff]
          %v1661 = vld [vmem:[#allocation2 + $0x78] sm:$0xff]
          %v1662 = vld [vmem:[#allocation2 + $0x80] sm:$0xff]
          %v1663 = vld [vmem:[#allocation2 + $0x88] sm:$0xff]
          %v1664 = vld [vmem:[#allocation2 + $0x90] sm:$0xff]
          %v1665 = vld [vmem:[#allocation2 + $0x98] sm:$0xff]
          %v1666 = vld [vmem:[#allocation2 + $0xa0] sm:$0xff]
          %v1667 = vld [vmem:[#allocation2 + $0xa8] sm:$0xff]
          %v1668 = vld [vmem:[#allocation2 + $0xb0] sm:$0xff]
          %v1669 = vld [vmem:[#allocation2 + $0xb8] sm:$0xff]
          %v1670 = vld [vmem:[#allocation2 + $0xc0] sm:$0xff]
          %v1671 = vld [vmem:[#allocation2 + $0xc8] sm:$0xff]
          %v1672 = vld [vmem:[#allocation2 + $0xd0] sm:$0xff]
          %v1673 = vld [vmem:[#allocation2 + $0xd8] sm:$0xff]
          %v1674 = vld [vmem:[#allocation2 + $0xe0] sm:$0xff]
          %v1675 = vld [vmem:[#allocation2 + $0xe8] sm:$0xff]
          %v1676 = vld [vmem:[#allocation2 + $0xf0] sm:$0xff]
          %v1677 = vld [vmem:[#allocation2 + $0xf8] sm:$0xff]
          %v1678 = vld [vmem:[#allocation2 + $0x100] sm:$0xff]
          %v1679 = vld [vmem:[#allocation2 + $0x108] sm:$0xff]
          %v1680 = vld [vmem:[#allocation2 + $0x110] sm:$0xff]
          %v1681 = vld [vmem:[#allocation2 + $0x118] sm:$0xff]
          %v1682 = vld [vmem:[#allocation2 + $0x120] sm:$0xff]
          %v1683 = vld [vmem:[#allocation2 + $0x128] sm:$0xff]
          %v1684 = vld [vmem:[#allocation2 + $0x130] sm:$0xff]
          %v1685 = vld [vmem:[#allocation2 + $0x138] sm:$0xff]
          %v1686 = vld [vmem:[#allocation2 + $0x140] sm:$0xff]
          %v1687 = vld [vmem:[#allocation2 + $0x148] sm:$0xff]
          %v1688 = vld [vmem:[#allocation2 + $0x150] sm:$0xff]
          %v1689 = vld [vmem:[#allocation2 + $0x158] sm:$0xff]
          %v1690 = vld [vmem:[#allocation2 + $0x160] sm:$0xff]
          %v1691 = vld [vmem:[#allocation2 + $0x168] sm:$0xff]
          %v1692 = vld [vmem:[#allocation2 + $0x170] sm:$0xff]
          %v1693 = vld [vmem:[#allocation2 + $0x178] sm:$0xff]
          %v1694 = vld [vmem:[#allocation2 + $0x180] sm:$0xff]
          %v1695 = vld [vmem:[#allocation2 + $0x188] sm:$0xff]
          %v1696 = vld [vmem:[#allocation2 + $0x190] sm:$0xff]
          %v1697 = vld [vmem:[#allocation2 + $0x198] sm:$0xff]
          %v1698 = vld [vmem:[#allocation2 + $0x1a0] sm:$0xff]
          %v1699 = vld [vmem:[#allocation2 + $0x1a8] sm:$0xff]
          %v1700 = vld [vmem:[#allocation2 + $0x1b0] sm:$0xff]
          %v1701 = vld [vmem:[#allocation2 + $0x1b8] sm:$0xff]
          %v1702 = vld [vmem:[#allocation2 + $0x1c0] sm:$0xff]
          %v1703 = vld [vmem:[#allocation2 + $0x1c8] sm:$0xff]
          %v1704 = vld [vmem:[#allocation2 + $0x1d0] sm:$0xff]
          %v1705 = vld [vmem:[#allocation2 + $0x1d8] sm:$0xff]
          %v1706 = vld [vmem:[#allocation2 + $0x1e0] sm:$0xff]
          %v1707 = vld [vmem:[#allocation2 + $0x1e8] sm:$0xff]
          %v1708 = vld [vmem:[#allocation2 + $0x1f0] sm:$0xff]
          %v1709 = vld [vmem:[#allocation2 + $0x1f8] sm:$0xff]
          %1710 = vadd.xlane.f32.xlu0 %v1646
          %v1711 = vpop.xlane.xlu0 %1710
          %1712 = vadd.xlane.f32.xlu0 %v1647
          %v1713 = vpop.xlane.xlu0 %1712
          %1714 = vadd.xlane.f32.xlu0 %v1648
          %v1715 = vpop.xlane.xlu0 %1714
          %1716 = vadd.xlane.f32.xlu0 %v1649
          %v1717 = vpop.xlane.xlu0 %1716
          %1718 = vadd.xlane.f32.xlu0 %v1650
          %v1719 = vpop.xlane.xlu0 %1718
          %1720 = vadd.xlane.f32.xlu0 %v1651
          %v1721 = vpop.xlane.xlu0 %1720
          %1722 = vadd.xlane.f32.xlu0 %v1652
          %v1723 = vpop.xlane.xlu0 %1722
          %1724 = vadd.xlane.f32.xlu0 %v1653
          %v1725 = vpop.xlane.xlu0 %1724
          %1726 = vadd.xlane.f32.xlu0 %v1654
          %v1727 = vpop.xlane.xlu0 %1726
          %1728 = vadd.xlane.f32.xlu0 %v1655
          %v1729 = vpop.xlane.xlu0 %1728
          %1730 = vadd.xlane.f32.xlu0 %v1656
          %v1731 = vpop.xlane.xlu0 %1730
          %1732 = vadd.xlane.f32.xlu0 %v1657
          %v1733 = vpop.xlane.xlu0 %1732
          %1734 = vadd.xlane.f32.xlu0 %v1658
          %v1735 = vpop.xlane.xlu0 %1734
          %1736 = vadd.xlane.f32.xlu0 %v1659
          %v1737 = vpop.xlane.xlu0 %1736
          %1738 = vadd.xlane.f32.xlu0 %v1660
          %v1739 = vpop.xlane.xlu0 %1738
          %1740 = vadd.xlane.f32.xlu0 %v1661
          %v1741 = vpop.xlane.xlu0 %1740
          %1742 = vadd.xlane.f32.xlu0 %v1662
          %v1743 = vpop.xlane.xlu0 %1742
          %1744 = vadd.xlane.f32.xlu0 %v1663
          %v1745 = vpop.xlane.xlu0 %1744
          %1746 = vadd.xlane.f32.xlu0 %v1664
          %v1747 = vpop.xlane.xlu0 %1746
          %1748 = vadd.xlane.f32.xlu0 %v1665
          %v1749 = vpop.xlane.xlu0 %1748
          %1750 = vadd.xlane.f32.xlu0 %v1666
          %v1751 = vpop.xlane.xlu0 %1750
          %1752 = vadd.xlane.f32.xlu0 %v1667
          %v1753 = vpop.xlane.xlu0 %1752
          %1754 = vadd.xlane.f32.xlu0 %v1668
          %v1755 = vpop.xlane.xlu0 %1754
          %1756 = vadd.xlane.f32.xlu0 %v1669
          %v1757 = vpop.xlane.xlu0 %1756
          %1758 = vadd.xlane.f32.xlu0 %v1670
          %v1759 = vpop.xlane.xlu0 %1758
          %1760 = vadd.xlane.f32.xlu0 %v1671
          %v1761 = vpop.xlane.xlu0 %1760
          %1762 = vadd.xlane.f32.xlu0 %v1672
          %v1763 = vpop.xlane.xlu0 %1762
          %1764 = vadd.xlane.f32.xlu0 %v1673
          %v1765 = vpop.xlane.xlu0 %1764
          %1766 = vadd.xlane.f32.xlu0 %v1674
          %v1767 = vpop.xlane.xlu0 %1766
          %1768 = vadd.xlane.f32.xlu0 %v1675
          %v1769 = vpop.xlane.xlu0 %1768
          %1770 = vadd.xlane.f32.xlu0 %v1676
          %v1771 = vpop.xlane.xlu0 %1770
          %1772 = vadd.xlane.f32.xlu0 %v1677
          %v1773 = vpop.xlane.xlu0 %1772
          %1774 = vadd.xlane.f32.xlu0 %v1678
          %v1775 = vpop.xlane.xlu0 %1774
          %1776 = vadd.xlane.f32.xlu0 %v1679
          %v1777 = vpop.xlane.xlu0 %1776
          %1778 = vadd.xlane.f32.xlu0 %v1680
          %v1779 = vpop.xlane.xlu0 %1778
          %1780 = vadd.xlane.f32.xlu0 %v1681
          %v1781 = vpop.xlane.xlu0 %1780
          %1782 = vadd.xlane.f32.xlu0 %v1682
          %v1783 = vpop.xlane.xlu0 %1782
          %1784 = vadd.xlane.f32.xlu0 %v1683
          %v1785 = vpop.xlane.xlu0 %1784
          %1786 = vadd.xlane.f32.xlu0 %v1684
          %v1787 = vpop.xlane.xlu0 %1786
          %1788 = vadd.xlane.f32.xlu0 %v1685
          %v1789 = vpop.xlane.xlu0 %1788
          %1790 = vadd.xlane.f32.xlu0 %v1686
          %v1791 = vpop.xlane.xlu0 %1790
          %1792 = vadd.xlane.f32.xlu0 %v1687
          %v1793 = vpop.xlane.xlu0 %1792
          %1794 = vadd.xlane.f32.xlu0 %v1688
          %v1795 = vpop.xlane.xlu0 %1794
          %1796 = vadd.xlane.f32.xlu0 %v1689
          %v1797 = vpop.xlane.xlu0 %1796
          %1798 = vadd.xlane.f32.xlu0 %v1690
          %v1799 = vpop.xlane.xlu0 %1798
          %1800 = vadd.xlane.f32.xlu0 %v1691
          %v1801 = vpop.xlane.xlu0 %1800
          %1802 = vadd.xlane.f32.xlu0 %v1692
          %v1803 = vpop.xlane.xlu0 %1802
          %1804 = vadd.xlane.f32.xlu0 %v1693
          %v1805 = vpop.xlane.xlu0 %1804
          %1806 = vadd.xlane.f32.xlu0 %v1694
          %v1807 = vpop.xlane.xlu0 %1806
          %1808 = vadd.xlane.f32.xlu0 %v1695
          %v1809 = vpop.xlane.xlu0 %1808
          %1810 = vadd.xlane.f32.xlu0 %v1696
          %v1811 = vpop.xlane.xlu0 %1810
          %1812 = vadd.xlane.f32.xlu0 %v1697
          %v1813 = vpop.xlane.xlu0 %1812
          %1814 = vadd.xlane.f32.xlu0 %v1698
          %v1815 = vpop.xlane.xlu0 %1814
          %1816 = vadd.xlane.f32.xlu0 %v1699
          %v1817 = vpop.xlane.xlu0 %1816
          %1818 = vadd.xlane.f32.xlu0 %v1700
          %v1819 = vpop.xlane.xlu0 %1818
          %1820 = vadd.xlane.f32.xlu0 %v1701
          %v1821 = vpop.xlane.xlu0 %1820
          %1822 = vadd.xlane.f32.xlu0 %v1702
          %v1823 = vpop.xlane.xlu0 %1822
          %1824 = vadd.xlane.f32.xlu0 %v1703
          %v1825 = vpop.xlane.xlu0 %1824
          %1826 = vadd.xlane.f32.xlu0 %v1704
          %v1827 = vpop.xlane.xlu0 %1826
          %1828 = vadd.xlane.f32.xlu0 %v1705
          %v1829 = vpop.xlane.xlu0 %1828
          %1830 = vadd.xlane.f32.xlu0 %v1706
          %v1831 = vpop.xlane.xlu0 %1830
          %1832 = vadd.xlane.f32.xlu0 %v1707
          %v1833 = vpop.xlane.xlu0 %1832
          %1834 = vadd.xlane.f32.xlu0 %v1708
          %v1835 = vpop.xlane.xlu0 %1834
          %1836 = vadd.xlane.f32.xlu0 %v1709
          %v1837 = vpop.xlane.xlu0 %1836
          %v1838 = vmul.f32 %v1711, 0.00390625
          %v1839 = vmul.f32 %v1713, 0.00390625
          %v1840 = vmul.f32 %v1715, 0.00390625
          %v1841 = vmul.f32 %v1717, 0.00390625
          %v1842 = vmul.f32 %v1719, 0.00390625
          %v1843 = vmul.f32 %v1721, 0.00390625
          %v1844 = vmul.f32 %v1723, 0.00390625
          %v1845 = vmul.f32 %v1725, 0.00390625
          %v1846 = vmul.f32 %v1727, 0.00390625
          %v1847 = vmul.f32 %v1729, 0.00390625
          %v1848 = vmul.f32 %v1731, 0.00390625
          %v1849 = vmul.f32 %v1733, 0.00390625
          %v1850 = vmul.f32 %v1735, 0.00390625
          %v1851 = vmul.f32 %v1737, 0.00390625
          %v1852 = vmul.f32 %v1739, 0.00390625
          %v1853 = vmul.f32 %v1741, 0.00390625
          %v1854 = vmul.f32 %v1743, 0.00390625
          %v1855 = vmul.f32 %v1745, 0.00390625
          %v1856 = vmul.f32 %v1747, 0.00390625
          %v1857 = vmul.f32 %v1749, 0.00390625
          %v1858 = vmul.f32 %v1751, 0.00390625
          %v1859 = vmul.f32 %v1753, 0.00390625
          %v1860 = vmul.f32 %v1755, 0.00390625
          %v1861 = vmul.f32 %v1757, 0.00390625
          %v1862 = vmul.f32 %v1759, 0.00390625
          %v1863 = vmul.f32 %v1761, 0.00390625
          %v1864 = vmul.f32 %v1763, 0.00390625
          %v1865 = vmul.f32 %v1765, 0.00390625
          %v1866 = vmul.f32 %v1767, 0.00390625
          %v1867 = vmul.f32 %v1769, 0.00390625
          %v1868 = vmul.f32 %v1771, 0.00390625
          %v1869 = vmul.f32 %v1773, 0.00390625
          %v1870 = vmul.f32 %v1775, 0.00390625
          %v1871 = vmul.f32 %v1777, 0.00390625
          %v1872 = vmul.f32 %v1779, 0.00390625
          %v1873 = vmul.f32 %v1781, 0.00390625
          %v1874 = vmul.f32 %v1783, 0.00390625
          %v1875 = vmul.f32 %v1785, 0.00390625
          %v1876 = vmul.f32 %v1787, 0.00390625
          %v1877 = vmul.f32 %v1789, 0.00390625
          %v1878 = vmul.f32 %v1791, 0.00390625
          %v1879 = vmul.f32 %v1793, 0.00390625
          %v1880 = vmul.f32 %v1795, 0.00390625
          %v1881 = vmul.f32 %v1797, 0.00390625
          %v1882 = vmul.f32 %v1799, 0.00390625
          %v1883 = vmul.f32 %v1801, 0.00390625
          %v1884 = vmul.f32 %v1803, 0.00390625
          %v1885 = vmul.f32 %v1805, 0.00390625
          %v1886 = vmul.f32 %v1807, 0.00390625
          %v1887 = vmul.f32 %v1809, 0.00390625
          %v1888 = vmul.f32 %v1811, 0.00390625
          %v1889 = vmul.f32 %v1813, 0.00390625
          %v1890 = vmul.f32 %v1815, 0.00390625
          %v1891 = vmul.f32 %v1817, 0.00390625
          %v1892 = vmul.f32 %v1819, 0.00390625
          %v1893 = vmul.f32 %v1821, 0.00390625
          %v1894 = vmul.f32 %v1823, 0.00390625
          %v1895 = vmul.f32 %v1825, 0.00390625
          %v1896 = vmul.f32 %v1827, 0.00390625
          %v1897 = vmul.f32 %v1829, 0.00390625
          %v1898 = vmul.f32 %v1831, 0.00390625
          %v1899 = vmul.f32 %v1833, 0.00390625
          %v1900 = vmul.f32 %v1835, 0.00390625
          %v1901 = vmul.f32 %v1837, 0.00390625
          %v1902 = vld [vmem:[%s3] sm:$0xff]
          %v1903 = vld [vmem:[%s3 + $0x8] sm:$0xff]
          %v1904 = vld [vmem:[%s3 + $0x10] sm:$0xff]
          %v1905 = vld [vmem:[%s3 + $0x18] sm:$0xff]
          %v1906 = vld [vmem:[%s3 + $0x20] sm:$0xff]
          %v1907 = vld [vmem:[%s3 + $0x28] sm:$0xff]
          %v1908 = vld [vmem:[%s3 + $0x30] sm:$0xff]
          %v1909 = vld [vmem:[%s3 + $0x38] sm:$0xff]
          %v1910 = vld [vmem:[%s3 + $0x40] sm:$0xff]
          %v1911 = vld [vmem:[%s3 + $0x48] sm:$0xff]
          %v1912 = vld [vmem:[%s3 + $0x50] sm:$0xff]
          %v1913 = vld [vmem:[%s3 + $0x58] sm:$0xff]
          %v1914 = vld [vmem:[%s3 + $0x60] sm:$0xff]
          %v1915 = vld [vmem:[%s3 + $0x68] sm:$0xff]
          %v1916 = vld [vmem:[%s3 + $0x70] sm:$0xff]
          %v1917 = vld [vmem:[%s3 + $0x78] sm:$0xff]
          %v1918 = vld [vmem:[%s3 + $0x80] sm:$0xff]
          %v1919 = vld [vmem:[%s3 + $0x88] sm:$0xff]
          %v1920 = vld [vmem:[%s3 + $0x90] sm:$0xff]
          %v1921 = vld [vmem:[%s3 + $0x98] sm:$0xff]
          %v1922 = vld [vmem:[%s3 + $0xa0] sm:$0xff]
          %v1923 = vld [vmem:[%s3 + $0xa8] sm:$0xff]
          %v1924 = vld [vmem:[%s3 + $0xb0] sm:$0xff]
          %v1925 = vld [vmem:[%s3 + $0xb8] sm:$0xff]
          %v1926 = vld [vmem:[%s3 + $0xc0] sm:$0xff]
          %v1927 = vld [vmem:[%s3 + $0xc8] sm:$0xff]
          %v1928 = vld [vmem:[%s3 + $0xd0] sm:$0xff]
          %v1929 = vld [vmem:[%s3 + $0xd8] sm:$0xff]
          %v1930 = vld [vmem:[%s3 + $0xe0] sm:$0xff]
          %v1931 = vld [vmem:[%s3 + $0xe8] sm:$0xff]
          %v1932 = vld [vmem:[%s3 + $0xf0] sm:$0xff]
          %v1933 = vld [vmem:[%s3 + $0xf8] sm:$0xff]
          %v1934 = vld [vmem:[%s3 + $0x100] sm:$0xff]
          %v1935 = vld [vmem:[%s3 + $0x108] sm:$0xff]
          %v1936 = vld [vmem:[%s3 + $0x110] sm:$0xff]
          %v1937 = vld [vmem:[%s3 + $0x118] sm:$0xff]
          %v1938 = vld [vmem:[%s3 + $0x120] sm:$0xff]
          %v1939 = vld [vmem:[%s3 + $0x128] sm:$0xff]
          %v1940 = vld [vmem:[%s3 + $0x130] sm:$0xff]
          %v1941 = vld [vmem:[%s3 + $0x138] sm:$0xff]
          %v1942 = vld [vmem:[%s3 + $0x140] sm:$0xff]
          %v1943 = vld [vmem:[%s3 + $0x148] sm:$0xff]
          %v1944 = vld [vmem:[%s3 + $0x150] sm:$0xff]
          %v1945 = vld [vmem:[%s3 + $0x158] sm:$0xff]
          %v1946 = vld [vmem:[%s3 + $0x160] sm:$0xff]
          %v1947 = vld [vmem:[%s3 + $0x168] sm:$0xff]
          %v1948 = vld [vmem:[%s3 + $0x170] sm:$0xff]
          %v1949 = vld [vmem:[%s3 + $0x178] sm:$0xff]
          %v1950 = vld [vmem:[%s3 + $0x180] sm:$0xff]
          %v1951 = vld [vmem:[%s3 + $0x188] sm:$0xff]
          %v1952 = vld [vmem:[%s3 + $0x190] sm:$0xff]
          %v1953 = vld [vmem:[%s3 + $0x198] sm:$0xff]
          %v1954 = vld [vmem:[%s3 + $0x1a0] sm:$0xff]
          %v1955 = vld [vmem:[%s3 + $0x1a8] sm:$0xff]
          %v1956 = vld [vmem:[%s3 + $0x1b0] sm:$0xff]
          %v1957 = vld [vmem:[%s3 + $0x1b8] sm:$0xff]
          %v1958 = vld [vmem:[%s3 + $0x1c0] sm:$0xff]
          %v1959 = vld [vmem:[%s3 + $0x1c8] sm:$0xff]
          %v1960 = vld [vmem:[%s3 + $0x1d0] sm:$0xff]
          %v1961 = vld [vmem:[%s3 + $0x1d8] sm:$0xff]
          %v1962 = vld [vmem:[%s3 + $0x1e0] sm:$0xff]
          %v1963 = vld [vmem:[%s3 + $0x1e8] sm:$0xff]
          %v1964 = vld [vmem:[%s3 + $0x1f0] sm:$0xff]
          %v1965 = vld [vmem:[%s3 + $0x1f8] sm:$0xff]
          %v1966 = vmul.f32 %v1838, %v1902
          %v1967 = vmul.f32 %v1839, %v1903
          %v1968 = vmul.f32 %v1840, %v1904
          %v1969 = vmul.f32 %v1841, %v1905
          %v1970 = vmul.f32 %v1842, %v1906
          %v1971 = vmul.f32 %v1843, %v1907
          %v1972 = vmul.f32 %v1844, %v1908
          %v1973 = vmul.f32 %v1845, %v1909
          %v1974 = vmul.f32 %v1846, %v1910
          %v1975 = vmul.f32 %v1847, %v1911
          %v1976 = vmul.f32 %v1848, %v1912
          %v1977 = vmul.f32 %v1849, %v1913
          %v1978 = vmul.f32 %v1850, %v1914
          %v1979 = vmul.f32 %v1851, %v1915
          %v1980 = vmul.f32 %v1852, %v1916
          %v1981 = vmul.f32 %v1853, %v1917
          %v1982 = vmul.f32 %v1854, %v1918
          %v1983 = vmul.f32 %v1855, %v1919
          %v1984 = vmul.f32 %v1856, %v1920
          %v1985 = vmul.f32 %v1857, %v1921
          %v1986 = vmul.f32 %v1858, %v1922
          %v1987 = vmul.f32 %v1859, %v1923
          %v1988 = vmul.f32 %v1860, %v1924
          %v1989 = vmul.f32 %v1861, %v1925
          %v1990 = vmul.f32 %v1862, %v1926
          %v1991 = vmul.f32 %v1863, %v1927
          %v1992 = vmul.f32 %v1864, %v1928
          %v1993 = vmul.f32 %v1865, %v1929
          %v1994 = vmul.f32 %v1866, %v1930
          %v1995 = vmul.f32 %v1867, %v1931
          %v1996 = vmul.f32 %v1868, %v1932
          %v1997 = vmul.f32 %v1869, %v1933
          %v1998 = vmul.f32 %v1870, %v1934
          %v1999 = vmul.f32 %v1871, %v1935
          %v2000 = vmul.f32 %v1872, %v1936
          %v2001 = vmul.f32 %v1873, %v1937
          %v2002 = vmul.f32 %v1874, %v1938
          %v2003 = vmul.f32 %v1875, %v1939
          %v2004 = vmul.f32 %v1876, %v1940
          %v2005 = vmul.f32 %v1877, %v1941
          %v2006 = vmul.f32 %v1878, %v1942
          %v2007 = vmul.f32 %v1879, %v1943
          %v2008 = vmul.f32 %v1880, %v1944
          %v2009 = vmul.f32 %v1881, %v1945
          %v2010 = vmul.f32 %v1882, %v1946
          %v2011 = vmul.f32 %v1883, %v1947
          %v2012 = vmul.f32 %v1884, %v1948
          %v2013 = vmul.f32 %v1885, %v1949
          %v2014 = vmul.f32 %v1886, %v1950
          %v2015 = vmul.f32 %v1887, %v1951
          %v2016 = vmul.f32 %v1888, %v1952
          %v2017 = vmul.f32 %v1889, %v1953
          %v2018 = vmul.f32 %v1890, %v1954
          %v2019 = vmul.f32 %v1891, %v1955
          %v2020 = vmul.f32 %v1892, %v1956
          %v2021 = vmul.f32 %v1893, %v1957
          %v2022 = vmul.f32 %v1894, %v1958
          %v2023 = vmul.f32 %v1895, %v1959
          %v2024 = vmul.f32 %v1896, %v1960
          %v2025 = vmul.f32 %v1897, %v1961
          %v2026 = vmul.f32 %v1898, %v1962
          %v2027 = vmul.f32 %v1899, %v1963
          %v2028 = vmul.f32 %v1900, %v1964
          %v2029 = vmul.f32 %v1901, %v1965
          %vm2030 = vcmask 261120
          %v2031 = vsel %vm2030, %v1966, 0.0
          %v2032 = vsel %vm2030, %v1967, 0.0
          %v2033 = vadd.f32 %v2031, %v2032
          %v2034 = vsel %vm2030, %v1968, 0.0
          %v2035 = vadd.f32 %v2033, %v2034
          %v2036 = vsel %vm2030, %v1969, 0.0
          %v2037 = vadd.f32 %v2035, %v2036
          %v2038 = vsel %vm2030, %v1970, 0.0
          %v2039 = vadd.f32 %v2037, %v2038
          %v2040 = vsel %vm2030, %v1971, 0.0
          %v2041 = vadd.f32 %v2039, %v2040
          %v2042 = vsel %vm2030, %v1972, 0.0
          %v2043 = vadd.f32 %v2041, %v2042
          %v2044 = vsel %vm2030, %v1973, 0.0
          %v2045 = vadd.f32 %v2043, %v2044
          %v2046 = vsel %vm2030, %v1974, 0.0
          %v2047 = vadd.f32 %v2045, %v2046
          %v2048 = vsel %vm2030, %v1975, 0.0
          %v2049 = vadd.f32 %v2047, %v2048
          %v2050 = vsel %vm2030, %v1976, 0.0
          %v2051 = vadd.f32 %v2049, %v2050
          %v2052 = vsel %vm2030, %v1977, 0.0
          %v2053 = vadd.f32 %v2051, %v2052
          %v2054 = vsel %vm2030, %v1978, 0.0
          %v2055 = vadd.f32 %v2053, %v2054
          %v2056 = vsel %vm2030, %v1979, 0.0
          %v2057 = vadd.f32 %v2055, %v2056
          %v2058 = vsel %vm2030, %v1980, 0.0
          %v2059 = vadd.f32 %v2057, %v2058
          %v2060 = vsel %vm2030, %v1981, 0.0
          %v2061 = vadd.f32 %v2059, %v2060
          %v2062 = vsel %vm2030, %v1982, 0.0
          %v2063 = vadd.f32 %v2061, %v2062
          %v2064 = vsel %vm2030, %v1983, 0.0
          %v2065 = vadd.f32 %v2063, %v2064
          %v2066 = vsel %vm2030, %v1984, 0.0
          %v2067 = vadd.f32 %v2065, %v2066
          %v2068 = vsel %vm2030, %v1985, 0.0
          %v2069 = vadd.f32 %v2067, %v2068
          %v2070 = vsel %vm2030, %v1986, 0.0
          %v2071 = vadd.f32 %v2069, %v2070
          %v2072 = vsel %vm2030, %v1987, 0.0
          %v2073 = vadd.f32 %v2071, %v2072
          %v2074 = vsel %vm2030, %v1988, 0.0
          %v2075 = vadd.f32 %v2073, %v2074
          %v2076 = vsel %vm2030, %v1989, 0.0
          %v2077 = vadd.f32 %v2075, %v2076
          %v2078 = vsel %vm2030, %v1990, 0.0
          %v2079 = vadd.f32 %v2077, %v2078
          %v2080 = vsel %vm2030, %v1991, 0.0
          %v2081 = vadd.f32 %v2079, %v2080
          %v2082 = vsel %vm2030, %v1992, 0.0
          %v2083 = vadd.f32 %v2081, %v2082
          %v2084 = vsel %vm2030, %v1993, 0.0
          %v2085 = vadd.f32 %v2083, %v2084
          %v2086 = vsel %vm2030, %v1994, 0.0
          %v2087 = vadd.f32 %v2085, %v2086
          %v2088 = vsel %vm2030, %v1995, 0.0
          %v2089 = vadd.f32 %v2087, %v2088
          %v2090 = vsel %vm2030, %v1996, 0.0
          %v2091 = vadd.f32 %v2089, %v2090
          %v2092 = vsel %vm2030, %v1997, 0.0
          %v2093 = vadd.f32 %v2091, %v2092
          %v2094 = vsel %vm2030, %v1998, 0.0
          %v2095 = vadd.f32 %v2093, %v2094
          %v2096 = vsel %vm2030, %v1999, 0.0
          %v2097 = vadd.f32 %v2095, %v2096
          %v2098 = vsel %vm2030, %v2000, 0.0
          %v2099 = vadd.f32 %v2097, %v2098
          %v2100 = vsel %vm2030, %v2001, 0.0
          %v2101 = vadd.f32 %v2099, %v2100
          %v2102 = vsel %vm2030, %v2002, 0.0
          %v2103 = vadd.f32 %v2101, %v2102
          %v2104 = vsel %vm2030, %v2003, 0.0
          %v2105 = vadd.f32 %v2103, %v2104
          %v2106 = vsel %vm2030, %v2004, 0.0
          %v2107 = vadd.f32 %v2105, %v2106
          %v2108 = vsel %vm2030, %v2005, 0.0
          %v2109 = vadd.f32 %v2107, %v2108
          %v2110 = vsel %vm2030, %v2006, 0.0
          %v2111 = vadd.f32 %v2109, %v2110
          %v2112 = vsel %vm2030, %v2007, 0.0
          %v2113 = vadd.f32 %v2111, %v2112
          %v2114 = vsel %vm2030, %v2008, 0.0
          %v2115 = vadd.f32 %v2113, %v2114
          %v2116 = vsel %vm2030, %v2009, 0.0
          %v2117 = vadd.f32 %v2115, %v2116
          %v2118 = vsel %vm2030, %v2010, 0.0
          %v2119 = vadd.f32 %v2117, %v2118
          %v2120 = vsel %vm2030, %v2011, 0.0
          %v2121 = vadd.f32 %v2119, %v2120
          %v2122 = vsel %vm2030, %v2012, 0.0
          %v2123 = vadd.f32 %v2121, %v2122
          %v2124 = vsel %vm2030, %v2013, 0.0
          %v2125 = vadd.f32 %v2123, %v2124
          %v2126 = vsel %vm2030, %v2014, 0.0
          %v2127 = vadd.f32 %v2125, %v2126
          %v2128 = vsel %vm2030, %v2015, 0.0
          %v2129 = vadd.f32 %v2127, %v2128
          %v2130 = vsel %vm2030, %v2016, 0.0
          %v2131 = vadd.f32 %v2129, %v2130
          %v2132 = vsel %vm2030, %v2017, 0.0
          %v2133 = vadd.f32 %v2131, %v2132
          %v2134 = vsel %vm2030, %v2018, 0.0
          %v2135 = vadd.f32 %v2133, %v2134
          %v2136 = vsel %vm2030, %v2019, 0.0
          %v2137 = vadd.f32 %v2135, %v2136
          %v2138 = vsel %vm2030, %v2020, 0.0
          %v2139 = vadd.f32 %v2137, %v2138
          %v2140 = vsel %vm2030, %v2021, 0.0
          %v2141 = vadd.f32 %v2139, %v2140
          %v2142 = vsel %vm2030, %v2022, 0.0
          %v2143 = vadd.f32 %v2141, %v2142
          %v2144 = vsel %vm2030, %v2023, 0.0
          %v2145 = vadd.f32 %v2143, %v2144
          %v2146 = vsel %vm2030, %v2024, 0.0
          %v2147 = vadd.f32 %v2145, %v2146
          %v2148 = vsel %vm2030, %v2025, 0.0
          %v2149 = vadd.f32 %v2147, %v2148
          %v2150 = vsel %vm2030, %v2026, 0.0
          %v2151 = vadd.f32 %v2149, %v2150
          %v2152 = vsel %vm2030, %v2027, 0.0
          %v2153 = vadd.f32 %v2151, %v2152
          %v2154 = vsel %vm2030, %v2028, 0.0
          %v2155 = vadd.f32 %v2153, %v2154
          %v2156 = vsel %vm2030, %v2029, 0.0
          %v2157 = vadd.f32 %v2155, %v2156
          %v2158 = vrot.slane %v2157, 4
          %v2159 = vadd.f32 %v2157, %v2158
          %v2160 = vrot.slane %v2159, 2
          %v2161 = vadd.f32 %v2159, %v2160
          %v2162 = vrot.slane %v2161, 1
          %v2163 = vadd.f32 %v2161, %v2162
          %v2164 = vld [vmem:[%s4] sm:$0x1]
          %v2165 = vadd.f32 %v2163, %v2164
          %vm2166 = vcmask 253952
          %2167 = vst.msk [vmem:[%s255] sm:$0x1] %vm2166, %v2165
        $region48: #{tpu_custom_call.1} parent=39 // pred_fallthru
          _
        %s2168 = sand.u32 %s156, 1
        %s2169 = scalar_lea.sflag [#allocation4], %s2168
        %s2170 = sand.u32 %s156, 1
        %s2171 = scalar_lea.vmem [#allocation3], %s2170
        // Predicated region
        $region49: #{tpu_custom_call.1} parent=39 // pred_check
          %p2172 = pneg %p166
        $region50: #{tpu_custom_call.1} parent=39 // pred_check_branch
          %2174 = sbr.rel (%p2172) target = $region52
        $region51: #{tpu_custom_call.1} parent=39 // pred_region
          %s2176 = ssub.s32 16, 16
          %2177 = vsyncadd %s2169, %s2176
          %s2178 = smul.addr %s23, 16
          %s2179 = scalar_lea.hbm %s5, %s2178
          %s2181 = sshll.u32 %s2171, 4
          %s2182 = int_to_ptr.vmem [resolvable:$true] %s2181
          %2184 = dma.vmem_to_hbm [thread:$0]  %s2182, 16, %s2179, %s2169
        $region52: #{tpu_custom_call.1} parent=39 // pred_fallthru
          _
      $region40: #{tpu_custom_call.1} parent=5 // pred_fallthru
        _
      %p2185 = scmp.le.s32.totalorder 2, %s14
      // Predicated region
      $region53: #{tpu_custom_call.1} parent=5 // pred_check
        %p2186 = pneg %p2185
      $region54: #{tpu_custom_call.1} parent=5 // pred_check_branch
        %2188 = sbr.rel (%p2186) target = $region56
      $region55: #{tpu_custom_call.1} parent=5 // pred_region
        %s2189 = ssub.s32 %s14, 2
        // Predicated region
        $region57: #{tpu_custom_call.1} parent=55 // pred_check
          %p2190 = pneg %p172
        $region58: #{tpu_custom_call.1} parent=55 // pred_check_branch
          %2192 = sbr.rel (%p2190) target = $region60
        $region59: #{tpu_custom_call.1} parent=55 // pred_region
          %s2193 = sand.u32 %s157, 1
          %s2194 = scalar_lea.sflag [#allocation4], %s2193
          %s2195 = sand.u32 %s157, 1
          %s2196 = scalar_lea.vmem [#allocation3], %s2195
          %2197 = dma.done %s2194, 16
        $region60: #{tpu_custom_call.1} parent=55 // pred_fallthru
          _
      $region56: #{tpu_custom_call.1} parent=5 // pred_fallthru
        _
    $region6: #{tpu_custom_call.1} parent=1 // loop_footer
      %s18 = sadd.s32 1, %s14
    $region7: #{tpu_custom_call.1} parent=1 // loop_footer_branch
      %13 = sbr.rel target = $region3
    $region8: #{tpu_custom_call.1} parent=1 // loop_exit
      _
    %2198 = vsyncpa [#allocation4], 1
    %s2199 = scalar_lea.sflag [#allocation4], 1
    %2200 = vsyncpa %s2199, 1

</llo_original>
